<compile_context>
chip_gen: v7x
topology: tpu7x:2x2x1
jax: 0.10.0
libtpu: 0.0.40
codegen_flags: <defaults>
</compile_context>

<pallas_src>
import jax
import jax.numpy as jnp
from jax.experimental import pallas as pl
from jax.experimental.pallas import tpu as pltpu

HIDDEN = 768           # fixed by nn.Linear(768, num_labels)
NUM_LABELS = 6         # synthetic len(config.CLASSIFICATION_LABELS)
L_PAD = 128            # lane-dense padded logit width (multiple of 128)
DROPOUT_P = 0.3        # eval-mode dropout is identity (see kernel)
SUBLANE = 8
MAX_BATCH_TILE = 128   # keeps f32 pooling temps + double buffers small in VMEM


def _round_up(x, m):
    return (x + m - 1) // m * m


def fused_head_kernel(x_ref, m_ref, wp_ref, bp_ref, w_ref, b_ref, out_ref):
    """Masked-mean pool + tanh pooler + dropout(eval) + classifier Linear.

    x_ref  : [TB, S, H]   bf16 token features (embedding + segment embedding)
    m_ref  : [TB, S, 1]   f32 attention mask
    wp_ref : [H, H]       bf16 pooler dense weight (transposed: in x out)
    bp_ref : [1, H]       f32 pooler dense bias
    w_ref  : [H, L_PAD]   bf16 classifier weight (transposed, zero-padded)
    b_ref  : [1, L_PAD]   f32 classifier bias (zero-padded)
    out_ref: [TB, L_PAD]  f32 logits (lane-dense padded)
    """
    m = m_ref[...]                                               # [TB, S, 1] f32
    # Masked mean pooling over the (tiny) sequence axis; product promotes to
    # f32 so the reduction accumulates in f32 without an explicit x upcast op.
    xm = x_ref[...] * m                                          # [TB, S, H] f32
    denom = jnp.maximum(jnp.sum(m, axis=1), 1.0)                 # [TB, 1]
    pooled = jnp.sum(xm, axis=1) / denom                         # [TB, H] f32

    # BERT-style pooler: po = tanh(pooled @ Wp + bp)  (bf16 MXU inputs, f32 acc)
    po = jnp.tanh(
        jnp.dot(pooled.astype(jnp.bfloat16), wp_ref[...],
                preferred_element_type=jnp.float32) + bp_ref[...]
    )

    # nn.Dropout(p=0.3): identity in eval/inference mode.
    # TODO(synk): training-mode dropout would use pltpu.prng_seed /
    # pltpu.prng_random_bits to build a Bernoulli keep-mask scaled by 1/(1-p).

    # final_output = self.linear(po), lane-dense padded to 128 outputs.
    out_ref[...] = jnp.dot(po.astype(jnp.bfloat16), w_ref[...],
                           preferred_element_type=jnp.float32) + b_ref[...]


def label_head(x_tok, mask, wp, bp, w_pad, b_pad):
    """x_tok [B,S,H] bf16, mask [B,S,1] f32 -> logits [B, NUM_LABELS] f32."""
    B, S, H = x_tok.shape
    assert H == HIDDEN and w_pad.shape == (HIDDEN, L_PAD)

    # Pad batch to a full tile; grid iterates batch tiles so work can be
    # sharded across TensorCores (v7x) via "parallel" dimension semantics.
    TB = min(MAX_BATCH_TILE, _round_up(B, SUBLANE))
    B_pad = _round_up(B, TB)
    if B_pad != B:
        x_tok = jnp.pad(x_tok, ((0, B_pad - B), (0, 0), (0, 0)))
        mask = jnp.pad(mask, ((0, B_pad - B), (0, 0), (0, 0)))
    grid = (B_pad // TB,)

    # Rough VMEM budget: every BlockSpec operand is double-buffered.
    per_step_bytes = (TB * S * HIDDEN * 2      # x tile (bf16)
                      + TB * S * 4             # mask tile
                      + HIDDEN * HIDDEN * 2    # pooler weight (bf16)
                      + HIDDEN * 4             # pooler bias
                      + HIDDEN * L_PAD * 2     # classifier weight (bf16)
                      + L_PAD * 4              # classifier bias
                      + TB * L_PAD * 4)        # output tile
    vmem_limit = min(max(4 * per_step_bytes, 32 * 1024 * 1024),
                     64 * 1024 * 1024)         # stay inside v7x physical VMEM

    cost = pl.CostEstimate(
        flops=2 * B_pad * HIDDEN * (S + HIDDEN + L_PAD),
        transcendentals=B_pad * HIDDEN,        # tanh
        bytes_accessed=(B_pad * S * HIDDEN * 2 + B_pad * S * 4
                        + HIDDEN * HIDDEN * 2 + HIDDEN * 4
                        + HIDDEN * L_PAD * 2 + L_PAD * 4
                        + B_pad * L_PAD * 4),
    )

    logits_pad = pl.pallas_call(
        fused_head_kernel,
        out_shape=jax.ShapeDtypeStruct((B_pad, L_PAD), jnp.float32),
        grid_spec=pl.GridSpec(
            grid=grid,
            in_specs=[
                pl.BlockSpec((TB, S, HIDDEN), lambda i: (i, 0, 0)),
                pl.BlockSpec((TB, S, 1), lambda i: (i, 0, 0)),
                pl.BlockSpec((HIDDEN, HIDDEN), lambda i: (0, 0)),
                pl.BlockSpec((1, HIDDEN), lambda i: (0, 0)),
                pl.BlockSpec((HIDDEN, L_PAD), lambda i: (0, 0)),
                pl.BlockSpec((1, L_PAD), lambda i: (0, 0)),
            ],
            out_specs=pl.BlockSpec((TB, L_PAD), lambda i: (i, 0)),
        ),
        compiler_params=pltpu.CompilerParams(
            dimension_semantics=("parallel",),
            vmem_limit_bytes=int(vmem_limit),
        ),
        cost_estimate=cost,
    )(x_tok, mask, wp, bp, w_pad, b_pad)

    return logits_pad[:B, :NUM_LABELS]


def label_backbone_forward(input_ids, attention_mask, token_type_ids, params):
    """Full forward: stubbed backbone embeddings (glue JAX) + fused Pallas head."""
    emb, seg_emb, wp, bp, w_pad, b_pad = params

    # TODO(synk): the real `self.model` is an external pretrained transformer
    # (BERT) returning a pooled output; stubbed here as token + segment
    # embeddings whose masked-mean pooling / tanh pooler / dropout / classifier
    # Linear are fused into a single Pallas kernel.
    x_tok = (emb[input_ids] + seg_emb[token_type_ids]).astype(jnp.bfloat16)  # [B,S,H]
    mask = attention_mask.astype(jnp.float32)[..., None]                     # [B,S,1]

    return label_head(x_tok, mask, wp, bp, w_pad, b_pad)                     # [B,L]


def reference_forward(input_ids, attention_mask, token_type_ids, params):
    """Pure-JAX reference mirroring the kernel's parameter dtypes."""
    emb, seg_emb, wp, bp, w_pad, b_pad = params
    x = (emb[input_ids] + seg_emb[token_type_ids]).astype(jnp.bfloat16)
    x = x.astype(jnp.float32)
    m = attention_mask.astype(jnp.float32)[..., None]
    pooled = (x * m).sum(axis=1) / jnp.maximum(m.sum(axis=1), 1.0)
    po = jnp.tanh(pooled @ wp.astype(jnp.float32) + bp)
    logits = po @ w_pad.astype(jnp.float32) + b_pad
    return logits[:, :NUM_LABELS]


def make_params(key):
    k_emb, k_seg, k_wp, k_bp, k_w, k_b = jax.random.split(key, 6)
    vocab = 32
    emb = 0.02 * jax.random.normal(k_emb, (vocab, HIDDEN), jnp.float32)
    seg_emb = 0.02 * jax.random.normal(k_seg, (2, HIDDEN), jnp.float32)
    # bf16 weights: kernel is HBM-bandwidth bound, halve the weight bytes.
    wp = (0.02 * jax.random.normal(k_wp, (HIDDEN, HIDDEN), jnp.float32)
          ).astype(jnp.bfloat16)
    bp = 0.02 * jax.random.normal(k_bp, (1, HIDDEN), jnp.float32)
    w = 0.02 * jax.random.normal(k_w, (HIDDEN, NUM_LABELS), jnp.float32)
    b = 0.02 * jax.random.normal(k_b, (1, NUM_LABELS), jnp.float32)
    # Lane-dense padding of the classifier head to 128 output lanes.
    w_pad = jnp.zeros((HIDDEN, L_PAD), jnp.bfloat16)
    w_pad = w_pad.at[:, :NUM_LABELS].set(w.astype(jnp.bfloat16))
    b_pad = jnp.zeros((1, L_PAD), jnp.float32).at[:, :NUM_LABELS].set(b)
    return emb, seg_emb, wp, bp, w_pad, b_pad


if __name__ == "__main__":
    key = jax.random.PRNGKey(0)
    k_params, k_ids, k_mask = jax.random.split(key, 3)

    B, S = 2, 8
    params = make_params(k_params)

    input_ids = jax.random.randint(k_ids, (B, S), 0, 32, dtype=jnp.int32)
    attention_mask = jnp.concatenate(
        [jnp.ones((B, S - 2), jnp.int32), jnp.zeros((B, 2), jnp.int32)], axis=1
    )
    token_type_ids = jnp.zeros((B, S), jnp.int32)

    logits = label_backbone_forward(input_ids, attention_mask, token_type_ids, params)
    jax.block_until_ready(logits)

    assert logits.shape == (B, NUM_LABELS)
    assert logits.dtype == jnp.float32

    ref = reference_forward(input_ids, attention_mask, token_type_ids, params)
    assert jnp.allclose(logits, ref, atol=1e-2, rtol=5e-2), (
        f"mismatch: max abs err {jnp.max(jnp.abs(logits - ref))}"
    )

    print("KERNEL_OK")
</pallas_src>

<mosaic_0001>
module attributes {stable_mosaic.version = 11 : i64} {
  func.func @fused_head_kernel(%arg0: i32, %arg1: memref<8x8x768xbf16, #tpu.memory_space<vmem>>, %arg2: memref<8x8x1xf32, #tpu.memory_space<vmem>>, %arg3: memref<768x768xbf16, #tpu.memory_space<vmem>>, %arg4: memref<1x768xf32, #tpu.memory_space<vmem>>, %arg5: memref<768x128xbf16, #tpu.memory_space<vmem>>, %arg6: memref<1x128xf32, #tpu.memory_space<vmem>>, %arg7: memref<8x128xf32, #tpu.memory_space<vmem>>) attributes {dimension_semantics = [#tpu.dimension_semantics<parallel>], iteration_bounds = array<i64: 1>, scalar_prefetch = 0 : i64, scratch_operands = 0 : i64, tpu.core_type = #tpu.core_type<tc>, window_params = [{transform_indices = @transform_0, window_bounds = array<i64: 8, 8, 768>}, {transform_indices = @transform_1, window_bounds = array<i64: 8, 8, 1>}, {pipeline_mode = #tpu.pipeline_mode<synchronous>, transform_indices = @transform_2, window_bounds = array<i64: 768, 768>}, {pipeline_mode = #tpu.pipeline_mode<synchronous>, transform_indices = @transform_3, window_bounds = array<i64: 1, 768>}, {pipeline_mode = #tpu.pipeline_mode<synchronous>, transform_indices = @transform_4, window_bounds = array<i64: 768, 128>}, {pipeline_mode = #tpu.pipeline_mode<synchronous>, transform_indices = @transform_5, window_bounds = array<i64: 1, 128>}, {transform_indices = @transform_6, window_bounds = array<i64: 8, 128>}]} {
    %c0 = arith.constant 0 : index
    %c0_0 = arith.constant 0 : index
    %c0_1 = arith.constant 0 : index
    %0 = vector.load %arg2[%c0, %c0_0, %c0_1] : memref<8x8x1xf32, #tpu.memory_space<vmem>>, vector<8x8x1xf32>
    %c0_2 = arith.constant 0 : index
    %c0_3 = arith.constant 0 : index
    %c0_4 = arith.constant 0 : index
    %1 = vector.load %arg1[%c0_2, %c0_3, %c0_4] : memref<8x8x768xbf16, #tpu.memory_space<vmem>>, vector<8x8x768xbf16>
    %2 = arith.extf %1 : vector<8x8x768xbf16> to vector<8x8x768xf32>
    %3 = vector.broadcast %0 : vector<8x8x1xf32> to vector<8x8x768xf32>
    %4 = arith.mulf %2, %3 : vector<8x8x768xf32>
    %cst = arith.constant dense<0.000000e+00> : vector<8x1xf32>
    %5 = vector.multi_reduction <add>, %0, %cst [1] : vector<8x8x1xf32> to vector<8x1xf32>
    %cst_5 = arith.constant 1.000000e+00 : f32
    %6 = vector.broadcast %cst_5 : f32 to vector<8x1xf32>
    %7 = arith.maximumf %5, %6 : vector<8x1xf32>
    %cst_6 = arith.constant dense<0.000000e+00> : vector<8x768xf32>
    %8 = vector.multi_reduction <add>, %4, %cst_6 [1] : vector<8x8x768xf32> to vector<8x768xf32>
    %9 = vector.broadcast %7 : vector<8x1xf32> to vector<8x768xf32>
    %10 = arith.divf %8, %9 : vector<8x768xf32>
    %11 = arith.truncf %10 : vector<8x768xf32> to vector<8x768xbf16>
    %c0_7 = arith.constant 0 : index
    %c0_8 = arith.constant 0 : index
    %12 = vector.load %arg3[%c0_7, %c0_8] : memref<768x768xbf16, #tpu.memory_space<vmem>>, vector<768x768xbf16>
    %cst_9 = arith.constant dense<0.000000e+00> : vector<8x768xf32>
    %13 = tpu.matmul %11, %12, %cst_9 {dimension_numbers = #tpu.dot_dimension_numbers<[1], [0], [0], [1], [0, 0, 1, 1], [], []>} : vector<8x768xbf16>, vector<768x768xbf16>, vector<8x768xf32> -> vector<8x768xf32>
    %c0_10 = arith.constant 0 : index
    %c0_11 = arith.constant 0 : index
    %14 = vector.load %arg4[%c0_10, %c0_11] : memref<1x768xf32, #tpu.memory_space<vmem>>, vector<1x768xf32>
    %15 = vector.broadcast %14 : vector<1x768xf32> to vector<8x768xf32>
    %16 = arith.addf %13, %15 : vector<8x768xf32>
    %17 = math.tanh %16 : vector<8x768xf32>
    %18 = arith.truncf %17 : vector<8x768xf32> to vector<8x768xbf16>
    %c0_12 = arith.constant 0 : index
    %c0_13 = arith.constant 0 : index
    %19 = vector.load %arg5[%c0_12, %c0_13] : memref<768x128xbf16, #tpu.memory_space<vmem>>, vector<768x128xbf16>
    %cst_14 = arith.constant dense<0.000000e+00> : vector<8x128xf32>
    %20 = tpu.matmul %18, %19, %cst_14 {dimension_numbers = #tpu.dot_dimension_numbers<[1], [0], [0], [1], [0, 0, 1, 1], [], []>} : vector<8x768xbf16>, vector<768x128xbf16>, vector<8x128xf32> -> vector<8x128xf32>
    %c0_15 = arith.constant 0 : index
    %c0_16 = arith.constant 0 : index
    %21 = vector.load %arg6[%c0_15, %c0_16] : memref<1x128xf32, #tpu.memory_space<vmem>>, vector<1x128xf32>
    %22 = vector.broadcast %21 : vector<1x128xf32> to vector<8x128xf32>
    %23 = arith.addf %20, %22 : vector<8x128xf32>
    %c0_17 = arith.constant 0 : index
    %c0_18 = arith.constant 0 : index
    %24 = vector.load %arg7[%c0_17, %c0_18] : memref<8x128xf32, #tpu.memory_space<vmem>>, vector<8x128xf32>
    tpu.vector_store %arg7[%c0_17, %c0_18], %23 {strides = array<i32>} : memref<8x128xf32, #tpu.memory_space<vmem>>, vector<8x128xf32>,
    return
  }
  func.func @transform_0(%arg0: i32) -> (i32, i32, i32) {
    %c0_i32 = arith.constant 0 : i32
    %c0_i32_0 = arith.constant 0 : i32
    %c0_i32_1 = arith.constant 0 : i32
    return %arg0, %c0_i32, %c0_i32_0 : i32, i32, i32
  }
  func.func @transform_1(%arg0: i32) -> (i32, i32, i32) {
    %c0_i32 = arith.constant 0 : i32
    %c0_i32_0 = arith.constant 0 : i32
    %c0_i32_1 = arith.constant 0 : i32
    return %arg0, %c0_i32, %c0_i32_0 : i32, i32, i32
  }
  func.func @transform_2(%arg0: i32) -> (i32, i32) {
    %c0_i32 = arith.constant 0 : i32
    %c0_i32_0 = arith.constant 0 : i32
    %c0_i32_1 = arith.constant 0 : i32
    return %c0_i32, %c0_i32_0 : i32, i32
  }
  func.func @transform_3(%arg0: i32) -> (i32, i32) {
    %c0_i32 = arith.constant 0 : i32
    %c0_i32_0 = arith.constant 0 : i32
    %c0_i32_1 = arith.constant 0 : i32
    return %c0_i32, %c0_i32_0 : i32, i32
  }
  func.func @transform_4(%arg0: i32) -> (i32, i32) {
    %c0_i32 = arith.constant 0 : i32
    %c0_i32_0 = arith.constant 0 : i32
    %c0_i32_1 = arith.constant 0 : i32
    return %c0_i32, %c0_i32_0 : i32, i32
  }
  func.func @transform_5(%arg0: i32) -> (i32, i32) {
    %c0_i32 = arith.constant 0 : i32
    %c0_i32_0 = arith.constant 0 : i32
    %c0_i32_1 = arith.constant 0 : i32
    return %c0_i32, %c0_i32_0 : i32, i32
  }
  func.func @transform_6(%arg0: i32) -> (i32, i32) {
    %c0_i32 = arith.constant 0 : i32
    %c0_i32_0 = arith.constant 0 : i32
    return %arg0, %c0_i32 : i32, i32
  }
}

</mosaic_0001>

<llo_original>
// kernel: tpu_custom_call.1
$region0: #{tpu_custom_call.1}
  #allocation0 [shape = 'u32[]', space=smem, size = 0x4, offset = 0x4, fixed_abs, tag = 'smem constant byte address 0x4 - core index']
  #allocation1 [shape = 'u32[144,128]{1,0:T(1,128)}', space=vmem, size = 0x12000, scoped, tag = 'internal scratch']
  %s0 = inlined_call_operand.hbm [shape: bf16[8,8,768], index: 0, kind: input, shape index: {}]
  %s1 = inlined_call_operand.vmem [shape: f32[8,8,1], index: 1, kind: input, shape index: {}]
  %s2 = inlined_call_operand.hbm [shape: bf16[768,768], index: 2, kind: input, shape index: {}]
  %s3 = inlined_call_operand.hbm [shape: f32[1,768], index: 3, kind: input, shape index: {}]
  %s4 = inlined_call_operand.hbm [shape: bf16[768,128], index: 4, kind: input, shape index: {}]
  %s5 = inlined_call_operand.hbm [shape: f32[1,128], index: 5, kind: input, shape index: {}]
  %s6 = inlined_call_operand.hbm [shape: f32[8,128], index: 6, kind: output, shape index: {}]
  %s7 = sld [smem:[#allocation0]]
  $region54: #{tpu_custom_call.1} parent=0
    _
  %s9 = ssub.s32 1, %s7
  %s10 = scalar_select 0, %s9, %s7
  $region1: #{tpu_custom_call.1} parent=0
    #allocation2 [shape = 'u8[98304]{0}', space=vmem, size = 0x18000, scoped, tag = 'input window, operand 0, single buffered']
    #allocation3 [shape = 's32[1]{0}', space=sflag, size = 0x4, scoped, tag = 'scoped memory for tpu_custom_call.1']
    #allocation4 [shape = 's32[1]{0}', space=sflag, size = 0x4, scoped, tag = 'scoped memory for tpu_custom_call.1']
    #allocation5 [shape = 'u8[1179648]{0}', space=vmem, size = 0x120000, scoped, tag = 'input window, operand 2, single buffered']
    #allocation6 [shape = 's32[1]{0}', space=sflag, size = 0x4, scoped, tag = 'scoped memory for tpu_custom_call.1']
    #allocation7 [shape = 'u8[3072]{0}', space=vmem, size = 0xc00, scoped, tag = 'input window, operand 3, single buffered']
    #allocation8 [shape = 'u8[196608]{0}', space=vmem, size = 0x30000, scoped, tag = 'input window, operand 4, single buffered']
    #allocation9 [shape = 's32[1]{0}', space=sflag, size = 0x4, scoped, tag = 'scoped memory for tpu_custom_call.1']
    #allocation10 [shape = 'u8[512]{0}', space=vmem, size = 0x400, scoped, tag = 'input window, operand 5, single buffered']
    #allocation11 [shape = 'u8[4096]{0}', space=vmem, size = 0x1000, scoped, tag = 'output window, operand 0, single buffered']
    %11 = vsyncpa [#allocation3], 0
    %12 = vsyncpa [#allocation6], 0
    %13 = vsyncpa [#allocation9], 0
    %14 = vsyncpa [#allocation4], 0
    // Predicated region
    $region2: #{tpu_custom_call.1} parent=1 // pred_check
      _
    $region3: #{tpu_custom_call.1} parent=1 // pred_check_branch
      %16 = sbr.rel (0) target = $region5
    $region4: #{tpu_custom_call.1} parent=1 // pred_region
      %s18 = ssub.s32 3072, 3072
      %19 = vsyncadd [#allocation3], %s18
      %s20 = sshll.u32 [#allocation2], 4
      %s21 = int_to_ptr.vmem [resolvable:$true] %s20
      %26 = dma.hbm_to_vmem [thread:$0]  %s0, 3072, %s21, [#allocation3], 384, 384, 24
    $region5: #{tpu_custom_call.1} parent=1 // pred_fallthru
      _
    // Predicated region
    $region6: #{tpu_custom_call.1} parent=1 // pred_check
      _
    $region7: #{tpu_custom_call.1} parent=1 // pred_check_branch
      %28 = sbr.rel (0) target = $region9
    $region8: #{tpu_custom_call.1} parent=1 // pred_region
      _
    $region9: #{tpu_custom_call.1} parent=1 // pred_fallthru
      _
    // Predicated region
    $region10: #{tpu_custom_call.1} parent=1 // pred_check
      _
    $region11: #{tpu_custom_call.1} parent=1 // pred_check_branch
      %30 = sbr.rel (0) target = $region13
    $region12: #{tpu_custom_call.1} parent=1 // pred_region
      %s32 = ssub.s32 36864, 36864
      %33 = vsyncadd [#allocation6], %s32
      %s34 = sshll.u32 [#allocation5], 4
      %s35 = int_to_ptr.vmem [resolvable:$true] %s34
      %40 = dma.hbm_to_vmem [thread:$0]  %s2, 36864, %s35, [#allocation6], 384, 384, 24
    $region13: #{tpu_custom_call.1} parent=1 // pred_fallthru
      _
    // Predicated region
    $region14: #{tpu_custom_call.1} parent=1 // pred_check
      _
    $region15: #{tpu_custom_call.1} parent=1 // pred_check_branch
      %42 = sbr.rel (0) target = $region17
    $region16: #{tpu_custom_call.1} parent=1 // pred_region
      %s44 = ssub.s32 96, 96
      %45 = vsyncadd [#allocation6], %s44
      %s47 = sshll.u32 [#allocation7], 4
      %s48 = int_to_ptr.vmem [resolvable:$true] %s47
      %50 = dma.hbm_to_vmem [thread:$0]  %s3, 96, %s48, [#allocation6]
    $region17: #{tpu_custom_call.1} parent=1 // pred_fallthru
      _
    // Predicated region
    $region18: #{tpu_custom_call.1} parent=1 // pred_check
      _
    $region19: #{tpu_custom_call.1} parent=1 // pred_check_branch
      %52 = sbr.rel (0) target = $region21
    $region20: #{tpu_custom_call.1} parent=1 // pred_region
      %s54 = ssub.s32 6144, 6144
      %55 = vsyncadd [#allocation9], %s54
      %s56 = sshll.u32 [#allocation8], 4
      %s57 = int_to_ptr.vmem [resolvable:$true] %s56
      %62 = dma.hbm_to_vmem [thread:$0]  %s4, 6144, %s57, [#allocation9], 64, 64, 4
    $region21: #{tpu_custom_call.1} parent=1 // pred_fallthru
      _
    // Predicated region
    $region22: #{tpu_custom_call.1} parent=1 // pred_check
      _
    $region23: #{tpu_custom_call.1} parent=1 // pred_check_branch
      %64 = sbr.rel (0) target = $region25
    $region24: #{tpu_custom_call.1} parent=1 // pred_region
      %s66 = ssub.s32 16, 16
      %67 = vsyncadd [#allocation9], %s66
      %s69 = sshll.u32 [#allocation10], 4
      %s70 = int_to_ptr.vmem [resolvable:$true] %s69
      %72 = dma.hbm_to_vmem [thread:$0]  %s5, 16, %s70, [#allocation9]
    $region25: #{tpu_custom_call.1} parent=1 // pred_fallthru
      _
    // Predicated region
    $region26: #{tpu_custom_call.1} parent=1 // pred_check
      _
    $region27: #{tpu_custom_call.1} parent=1 // pred_check_branch
      %74 = sbr.rel (0) target = $region29
    $region28: #{tpu_custom_call.1} parent=1 // pred_region
      %75 = dma.done [#allocation3], 3072
    $region29: #{tpu_custom_call.1} parent=1 // pred_fallthru
      _
    // Predicated region
    $region30: #{tpu_custom_call.1} parent=1 // pred_check
      _
    $region31: #{tpu_custom_call.1} parent=1 // pred_check_branch
      %77 = sbr.rel (0) target = $region33
    $region32: #{tpu_custom_call.1} parent=1 // pred_region
      %78 = dma.done [#allocation6], 36864
    $region33: #{tpu_custom_call.1} parent=1 // pred_fallthru
      _
    // Predicated region
    $region34: #{tpu_custom_call.1} parent=1 // pred_check
      _
    $region35: #{tpu_custom_call.1} parent=1 // pred_check_branch
      %80 = sbr.rel (0) target = $region37
    $region36: #{tpu_custom_call.1} parent=1 // pred_region
      %81 = dma.done [#allocation6], 96
    $region37: #{tpu_custom_call.1} parent=1 // pred_fallthru
      _
    // Predicated region
    $region38: #{tpu_custom_call.1} parent=1 // pred_check
      _
    $region39: #{tpu_custom_call.1} parent=1 // pred_check_branch
      %83 = sbr.rel (0) target = $region41
    $region40: #{tpu_custom_call.1} parent=1 // pred_region
      %84 = dma.done [#allocation9], 6144
    $region41: #{tpu_custom_call.1} parent=1 // pred_fallthru
      _
    // Predicated region
    $region42: #{tpu_custom_call.1} parent=1 // pred_check
      _
    $region43: #{tpu_custom_call.1} parent=1 // pred_check_branch
      %86 = sbr.rel (0) target = $region45
    $region44: #{tpu_custom_call.1} parent=1 // pred_region
      %87 = dma.done [#allocation9], 16
    $region45: #{tpu_custom_call.1} parent=1 // pred_fallthru
      _
    %v89 = vld [vmem:[%s1] sm:$0xff]
    %v90 = vld [vmem:[%s1 + $0x8] sm:$0xff]
    %v91 = vld [vmem:[%s1 + $0x10] sm:$0xff]
    %v92 = vld [vmem:[%s1 + $0x18] sm:$0xff]
    %v93 = vld [vmem:[%s1 + $0x20] sm:$0xff]
    %v94 = vld [vmem:[%s1 + $0x28] sm:$0xff]
    %v95 = vld [vmem:[%s1 + $0x30] sm:$0xff]
    %v96 = vld [vmem:[%s1 + $0x38] sm:$0xff]
    %v97 = vld [vmem:[#allocation2] sm:$0xff]
    %v98 = vld [vmem:[#allocation2 + $0x8] sm:$0xff]
    %v99 = vld [vmem:[#allocation2 + $0x10] sm:$0xff]
    %v100 = vld [vmem:[#allocation2 + $0x18] sm:$0xff]
    %v101 = vld [vmem:[#allocation2 + $0x20] sm:$0xff]
    %v102 = vld [vmem:[#allocation2 + $0x28] sm:$0xff]
    %v103 = vld [vmem:[#allocation2 + $0x30] sm:$0xff]
    %v104 = vld [vmem:[#allocation2 + $0x38] sm:$0xff]
    %v105 = vld [vmem:[#allocation2 + $0x40] sm:$0xff]
    %v106 = vld [vmem:[#allocation2 + $0x48] sm:$0xff]
    %v107 = vld [vmem:[#allocation2 + $0x50] sm:$0xff]
    %v108 = vld [vmem:[#allocation2 + $0x58] sm:$0xff]
    %v109 = vld [vmem:[#allocation2 + $0x60] sm:$0xff]
    %v110 = vld [vmem:[#allocation2 + $0x68] sm:$0xff]
    %v111 = vld [vmem:[#allocation2 + $0x70] sm:$0xff]
    %v112 = vld [vmem:[#allocation2 + $0x78] sm:$0xff]
    %v113 = vld [vmem:[#allocation2 + $0x80] sm:$0xff]
    %v114 = vld [vmem:[#allocation2 + $0x88] sm:$0xff]
    %v115 = vld [vmem:[#allocation2 + $0x90] sm:$0xff]
    %v116 = vld [vmem:[#allocation2 + $0x98] sm:$0xff]
    %v117 = vld [vmem:[#allocation2 + $0xa0] sm:$0xff]
    %v118 = vld [vmem:[#allocation2 + $0xa8] sm:$0xff]
    %v119 = vld [vmem:[#allocation2 + $0xb0] sm:$0xff]
    %v120 = vld [vmem:[#allocation2 + $0xb8] sm:$0xff]
    %v121 = vunpack.c.l.bf16 %v97
    %v122 = vunpack.c.h.bf16 %v97
    %v123 = vunpack.c.l.bf16 %v98
    %v124 = vunpack.c.h.bf16 %v98
    %v125 = vunpack.c.l.bf16 %v99
    %v126 = vunpack.c.h.bf16 %v99
    %v127 = vunpack.c.l.bf16 %v100
    %v128 = vunpack.c.h.bf16 %v100
    %v129 = vunpack.c.l.bf16 %v101
    %v130 = vunpack.c.h.bf16 %v101
    %v131 = vunpack.c.l.bf16 %v102
    %v132 = vunpack.c.h.bf16 %v102
    %v133 = vunpack.c.l.bf16 %v103
    %v134 = vunpack.c.h.bf16 %v103
    %v135 = vunpack.c.l.bf16 %v104
    %v136 = vunpack.c.h.bf16 %v104
    %v137 = vunpack.c.l.bf16 %v105
    %v138 = vunpack.c.h.bf16 %v105
    %v139 = vunpack.c.l.bf16 %v106
    %v140 = vunpack.c.h.bf16 %v106
    %v141 = vunpack.c.l.bf16 %v107
    %v142 = vunpack.c.h.bf16 %v107
    %v143 = vunpack.c.l.bf16 %v108
    %v144 = vunpack.c.h.bf16 %v108
    %v145 = vunpack.c.l.bf16 %v109
    %v146 = vunpack.c.h.bf16 %v109
    %v147 = vunpack.c.l.bf16 %v110
    %v148 = vunpack.c.h.bf16 %v110
    %v149 = vunpack.c.l.bf16 %v111
    %v150 = vunpack.c.h.bf16 %v111
    %v151 = vunpack.c.l.bf16 %v112
    %v152 = vunpack.c.h.bf16 %v112
    %v153 = vunpack.c.l.bf16 %v113
    %v154 = vunpack.c.h.bf16 %v113
    %v155 = vunpack.c.l.bf16 %v114
    %v156 = vunpack.c.h.bf16 %v114
    %v157 = vunpack.c.l.bf16 %v115
    %v158 = vunpack.c.h.bf16 %v115
    %v159 = vunpack.c.l.bf16 %v116
    %v160 = vunpack.c.h.bf16 %v116
    %v161 = vunpack.c.l.bf16 %v117
    %v162 = vunpack.c.h.bf16 %v117
    %v163 = vunpack.c.l.bf16 %v118
    %v164 = vunpack.c.h.bf16 %v118
    %v165 = vunpack.c.l.bf16 %v119
    %v166 = vunpack.c.h.bf16 %v119
    %v167 = vunpack.c.l.bf16 %v120
    %v168 = vunpack.c.h.bf16 %v120
    %170 = vset.pattern.permute.xlu0 0
    %171 = vperm.xlu0 %170, %v89
    %v172 = vpop.permute.xlu0 %171
    %175 = vset.pattern.permute.xlu0 0
    %176 = vperm.xlu0 %175, %v90
    %v177 = vpop.permute.xlu0 %176
    %180 = vset.pattern.permute.xlu0 0
    %181 = vperm.xlu0 %180, %v91
    %v182 = vpop.permute.xlu0 %181
    %185 = vset.pattern.permute.xlu0 0
    %186 = vperm.xlu0 %185, %v92
    %v187 = vpop.permute.xlu0 %186
    %190 = vset.pattern.permute.xlu0 0
    %191 = vperm.xlu0 %190, %v93
    %v192 = vpop.permute.xlu0 %191
    %195 = vset.pattern.permute.xlu0 0
    %196 = vperm.xlu0 %195, %v94
    %v197 = vpop.permute.xlu0 %196
    %200 = vset.pattern.permute.xlu0 0
    %201 = vperm.xlu0 %200, %v95
    %v202 = vpop.permute.xlu0 %201
    %205 = vset.pattern.permute.xlu0 0
    %206 = vperm.xlu0 %205, %v96
    %v207 = vpop.permute.xlu0 %206
    %v209 = vmul.f32 %v121, %v172
    %v210 = vmul.f32 %v122, %v172
    %v211 = vmul.f32 %v123, %v172
    %v212 = vmul.f32 %v124, %v172
    %v213 = vmul.f32 %v125, %v172
    %v214 = vmul.f32 %v126, %v172
    %v215 = vmul.f32 %v127, %v177
    %v216 = vmul.f32 %v128, %v177
    %v217 = vmul.f32 %v129, %v177
    %v218 = vmul.f32 %v130, %v177
    %v219 = vmul.f32 %v131, %v177
    %v220 = vmul.f32 %v132, %v177
    %v221 = vmul.f32 %v133, %v182
    %v222 = vmul.f32 %v134, %v182
    %v223 = vmul.f32 %v135, %v182
    %v224 = vmul.f32 %v136, %v182
    %v225 = vmul.f32 %v137, %v182
    %v226 = vmul.f32 %v138, %v182
    %v227 = vmul.f32 %v139, %v187
    %v228 = vmul.f32 %v140, %v187
    %v229 = vmul.f32 %v141, %v187
    %v230 = vmul.f32 %v142, %v187
    %v231 = vmul.f32 %v143, %v187
    %v232 = vmul.f32 %v144, %v187
    %v233 = vmul.f32 %v145, %v192
    %v234 = vmul.f32 %v146, %v192
    %v235 = vmul.f32 %v147, %v192
    %v236 = vmul.f32 %v148, %v192
    %v237 = vmul.f32 %v149, %v192
    %v238 = vmul.f32 %v150, %v192
    %v239 = vmul.f32 %v151, %v197
    %v240 = vmul.f32 %v152, %v197
    %v241 = vmul.f32 %v153, %v197
    %v242 = vmul.f32 %v154, %v197
    %v243 = vmul.f32 %v155, %v197
    %v244 = vmul.f32 %v156, %v197
    %v245 = vmul.f32 %v157, %v202
    %v246 = vmul.f32 %v158, %v202
    %v247 = vmul.f32 %v159, %v202
    %v248 = vmul.f32 %v160, %v202
    %v249 = vmul.f32 %v161, %v202
    %v250 = vmul.f32 %v162, %v202
    %v251 = vmul.f32 %v163, %v207
    %v252 = vmul.f32 %v164, %v207
    %v253 = vmul.f32 %v165, %v207
    %v254 = vmul.f32 %v166, %v207
    %v255 = vmul.f32 %v167, %v207
    %v256 = vmul.f32 %v168, %v207
    %vm257 = vcmask 7168
    %v258 = vsel %vm257, %v89, 0.0
    %v259 = vrot.slane %v258, 4
    %v260 = vadd.f32 %v258, %v259
    %v261 = vrot.slane %v260, 2
    %v262 = vadd.f32 %v260, %v261
    %v263 = vrot.slane %v262, 1
    %v264 = vadd.f32 %v262, %v263
    %v265 = vsel %vm257, %v90, 0.0
    %v266 = vrot.slane %v265, 4
    %v267 = vadd.f32 %v265, %v266
    %v268 = vrot.slane %v267, 2
    %v269 = vadd.f32 %v267, %v268
    %v270 = vrot.slane %v269, 1
    %v271 = vadd.f32 %v269, %v270
    %v272 = vsel %vm257, %v91, 0.0
    %v273 = vrot.slane %v272, 4
    %v274 = vadd.f32 %v272, %v273
    %v275 = vrot.slane %v274, 2
    %v276 = vadd.f32 %v274, %v275
    %v277 = vrot.slane %v276, 1
    %v278 = vadd.f32 %v276, %v277
    %v279 = vsel %vm257, %v92, 0.0
    %v280 = vrot.slane %v279, 4
    %v281 = vadd.f32 %v279, %v280
    %v282 = vrot.slane %v281, 2
    %v283 = vadd.f32 %v281, %v282
    %v284 = vrot.slane %v283, 1
    %v285 = vadd.f32 %v283, %v284
    %v286 = vsel %vm257, %v93, 0.0
    %v287 = vrot.slane %v286, 4
    %v288 = vadd.f32 %v286, %v287
    %v289 = vrot.slane %v288, 2
    %v290 = vadd.f32 %v288, %v289
    %v291 = vrot.slane %v290, 1
    %v292 = vadd.f32 %v290, %v291
    %v293 = vsel %vm257, %v94, 0.0
    %v294 = vrot.slane %v293, 4
    %v295 = vadd.f32 %v293, %v294
    %v296 = vrot.slane %v295, 2
    %v297 = vadd.f32 %v295, %v296
    %v298 = vrot.slane %v297, 1
    %v299 = vadd.f32 %v297, %v298
    %v300 = vsel %vm257, %v95, 0.0
    %v301 = vrot.slane %v300, 4
    %v302 = vadd.f32 %v300, %v301
    %v303 = vrot.slane %v302, 2
    %v304 = vadd.f32 %v302, %v303
    %v305 = vrot.slane %v304, 1
    %v306 = vadd.f32 %v304, %v305
    %v307 = vsel %vm257, %v96, 0.0
    %v308 = vrot.slane %v307, 4
    %v309 = vadd.f32 %v307, %v308
    %v310 = vrot.slane %v309, 2
    %v311 = vadd.f32 %v309, %v310
    %v312 = vrot.slane %v311, 1
    %v313 = vadd.f32 %v311, %v312
    %v314 = vmax.f32 %v264, 1.0
    %v315 = vmax.f32 %v271, 1.0
    %v316 = vmax.f32 %v278, 1.0
    %v317 = vmax.f32 %v285, 1.0
    %v318 = vmax.f32 %v292, 1.0
    %v319 = vmax.f32 %v299, 1.0
    %v320 = vmax.f32 %v306, 1.0
    %v321 = vmax.f32 %v313, 1.0
    %v322 = vrot.slane %v209, 4
    %v323 = vadd.f32 %v209, %v322
    %v324 = vrot.slane %v323, 2
    %v325 = vadd.f32 %v323, %v324
    %v326 = vrot.slane %v325, 1
    %v327 = vadd.f32 %v325, %v326
    %v328 = vrot.slane %v210, 4
    %v329 = vadd.f32 %v210, %v328
    %v330 = vrot.slane %v329, 2
    %v331 = vadd.f32 %v329, %v330
    %v332 = vrot.slane %v331, 1
    %v333 = vadd.f32 %v331, %v332
    %v334 = vrot.slane %v211, 4
    %v335 = vadd.f32 %v211, %v334
    %v336 = vrot.slane %v335, 2
    %v337 = vadd.f32 %v335, %v336
    %v338 = vrot.slane %v337, 1
    %v339 = vadd.f32 %v337, %v338
    %v340 = vrot.slane %v212, 4
    %v341 = vadd.f32 %v212, %v340
    %v342 = vrot.slane %v341, 2
    %v343 = vadd.f32 %v341, %v342
    %v344 = vrot.slane %v343, 1
    %v345 = vadd.f32 %v343, %v344
    %v346 = vrot.slane %v213, 4
    %v347 = vadd.f32 %v213, %v346
    %v348 = vrot.slane %v347, 2
    %v349 = vadd.f32 %v347, %v348
    %v350 = vrot.slane %v349, 1
    %v351 = vadd.f32 %v349, %v350
    %v352 = vrot.slane %v214, 4
    %v353 = vadd.f32 %v214, %v352
    %v354 = vrot.slane %v353, 2
    %v355 = vadd.f32 %v353, %v354
    %v356 = vrot.slane %v355, 1
    %v357 = vadd.f32 %v355, %v356
    %v358 = vrot.slane %v215, 4
    %v359 = vadd.f32 %v215, %v358
    %v360 = vrot.slane %v359, 2
    %v361 = vadd.f32 %v359, %v360
    %v362 = vrot.slane %v361, 1
    %v363 = vadd.f32 %v361, %v362
    %v364 = vrot.slane %v216, 4
    %v365 = vadd.f32 %v216, %v364
    %v366 = vrot.slane %v365, 2
    %v367 = vadd.f32 %v365, %v366
    %v368 = vrot.slane %v367, 1
    %v369 = vadd.f32 %v367, %v368
    %v370 = vrot.slane %v217, 4
    %v371 = vadd.f32 %v217, %v370
    %v372 = vrot.slane %v371, 2
    %v373 = vadd.f32 %v371, %v372
    %v374 = vrot.slane %v373, 1
    %v375 = vadd.f32 %v373, %v374
    %v376 = vrot.slane %v218, 4
    %v377 = vadd.f32 %v218, %v376
    %v378 = vrot.slane %v377, 2
    %v379 = vadd.f32 %v377, %v378
    %v380 = vrot.slane %v379, 1
    %v381 = vadd.f32 %v379, %v380
    %v382 = vrot.slane %v219, 4
    %v383 = vadd.f32 %v219, %v382
    %v384 = vrot.slane %v383, 2
    %v385 = vadd.f32 %v383, %v384
    %v386 = vrot.slane %v385, 1
    %v387 = vadd.f32 %v385, %v386
    %v388 = vrot.slane %v220, 4
    %v389 = vadd.f32 %v220, %v388
    %v390 = vrot.slane %v389, 2
    %v391 = vadd.f32 %v389, %v390
    %v392 = vrot.slane %v391, 1
    %v393 = vadd.f32 %v391, %v392
    %v394 = vrot.slane %v221, 4
    %v395 = vadd.f32 %v221, %v394
    %v396 = vrot.slane %v395, 2
    %v397 = vadd.f32 %v395, %v396
    %v398 = vrot.slane %v397, 1
    %v399 = vadd.f32 %v397, %v398
    %v400 = vrot.slane %v222, 4
    %v401 = vadd.f32 %v222, %v400
    %v402 = vrot.slane %v401, 2
    %v403 = vadd.f32 %v401, %v402
    %v404 = vrot.slane %v403, 1
    %v405 = vadd.f32 %v403, %v404
    %v406 = vrot.slane %v223, 4
    %v407 = vadd.f32 %v223, %v406
    %v408 = vrot.slane %v407, 2
    %v409 = vadd.f32 %v407, %v408
    %v410 = vrot.slane %v409, 1
    %v411 = vadd.f32 %v409, %v410
    %v412 = vrot.slane %v224, 4
    %v413 = vadd.f32 %v224, %v412
    %v414 = vrot.slane %v413, 2
    %v415 = vadd.f32 %v413, %v414
    %v416 = vrot.slane %v415, 1
    %v417 = vadd.f32 %v415, %v416
    %v418 = vrot.slane %v225, 4
    %v419 = vadd.f32 %v225, %v418
    %v420 = vrot.slane %v419, 2
    %v421 = vadd.f32 %v419, %v420
    %v422 = vrot.slane %v421, 1
    %v423 = vadd.f32 %v421, %v422
    %v424 = vrot.slane %v226, 4
    %v425 = vadd.f32 %v226, %v424
    %v426 = vrot.slane %v425, 2
    %v427 = vadd.f32 %v425, %v426
    %v428 = vrot.slane %v427, 1
    %v429 = vadd.f32 %v427, %v428
    %v430 = vrot.slane %v227, 4
    %v431 = vadd.f32 %v227, %v430
    %v432 = vrot.slane %v431, 2
    %v433 = vadd.f32 %v431, %v432
    %v434 = vrot.slane %v433, 1
    %v435 = vadd.f32 %v433, %v434
    %v436 = vrot.slane %v228, 4
    %v437 = vadd.f32 %v228, %v436
    %v438 = vrot.slane %v437, 2
    %v439 = vadd.f32 %v437, %v438
    %v440 = vrot.slane %v439, 1
    %v441 = vadd.f32 %v439, %v440
    %v442 = vrot.slane %v229, 4
    %v443 = vadd.f32 %v229, %v442
    %v444 = vrot.slane %v443, 2
    %v445 = vadd.f32 %v443, %v444
    %v446 = vrot.slane %v445, 1
    %v447 = vadd.f32 %v445, %v446
    %v448 = vrot.slane %v230, 4
    %v449 = vadd.f32 %v230, %v448
    %v450 = vrot.slane %v449, 2
    %v451 = vadd.f32 %v449, %v450
    %v452 = vrot.slane %v451, 1
    %v453 = vadd.f32 %v451, %v452
    %v454 = vrot.slane %v231, 4
    %v455 = vadd.f32 %v231, %v454
    %v456 = vrot.slane %v455, 2
    %v457 = vadd.f32 %v455, %v456
    %v458 = vrot.slane %v457, 1
    %v459 = vadd.f32 %v457, %v458
    %v460 = vrot.slane %v232, 4
    %v461 = vadd.f32 %v232, %v460
    %v462 = vrot.slane %v461, 2
    %v463 = vadd.f32 %v461, %v462
    %v464 = vrot.slane %v463, 1
    %v465 = vadd.f32 %v463, %v464
    %v466 = vrot.slane %v233, 4
    %v467 = vadd.f32 %v233, %v466
    %v468 = vrot.slane %v467, 2
    %v469 = vadd.f32 %v467, %v468
    %v470 = vrot.slane %v469, 1
    %v471 = vadd.f32 %v469, %v470
    %v472 = vrot.slane %v234, 4
    %v473 = vadd.f32 %v234, %v472
    %v474 = vrot.slane %v473, 2
    %v475 = vadd.f32 %v473, %v474
    %v476 = vrot.slane %v475, 1
    %v477 = vadd.f32 %v475, %v476
    %v478 = vrot.slane %v235, 4
    %v479 = vadd.f32 %v235, %v478
    %v480 = vrot.slane %v479, 2
    %v481 = vadd.f32 %v479, %v480
    %v482 = vrot.slane %v481, 1
    %v483 = vadd.f32 %v481, %v482
    %v484 = vrot.slane %v236, 4
    %v485 = vadd.f32 %v236, %v484
    %v486 = vrot.slane %v485, 2
    %v487 = vadd.f32 %v485, %v486
    %v488 = vrot.slane %v487, 1
    %v489 = vadd.f32 %v487, %v488
    %v490 = vrot.slane %v237, 4
    %v491 = vadd.f32 %v237, %v490
    %v492 = vrot.slane %v491, 2
    %v493 = vadd.f32 %v491, %v492
    %v494 = vrot.slane %v493, 1
    %v495 = vadd.f32 %v493, %v494
    %v496 = vrot.slane %v238, 4
    %v497 = vadd.f32 %v238, %v496
    %v498 = vrot.slane %v497, 2
    %v499 = vadd.f32 %v497, %v498
    %v500 = vrot.slane %v499, 1
    %v501 = vadd.f32 %v499, %v500
    %v502 = vrot.slane %v239, 4
    %v503 = vadd.f32 %v239, %v502
    %v504 = vrot.slane %v503, 2
    %v505 = vadd.f32 %v503, %v504
    %v506 = vrot.slane %v505, 1
    %v507 = vadd.f32 %v505, %v506
    %v508 = vrot.slane %v240, 4
    %v509 = vadd.f32 %v240, %v508
    %v510 = vrot.slane %v509, 2
    %v511 = vadd.f32 %v509, %v510
    %v512 = vrot.slane %v511, 1
    %v513 = vadd.f32 %v511, %v512
    %v514 = vrot.slane %v241, 4
    %v515 = vadd.f32 %v241, %v514
    %v516 = vrot.slane %v515, 2
    %v517 = vadd.f32 %v515, %v516
    %v518 = vrot.slane %v517, 1
    %v519 = vadd.f32 %v517, %v518
    %v520 = vrot.slane %v242, 4
    %v521 = vadd.f32 %v242, %v520
    %v522 = vrot.slane %v521, 2
    %v523 = vadd.f32 %v521, %v522
    %v524 = vrot.slane %v523, 1
    %v525 = vadd.f32 %v523, %v524
    %v526 = vrot.slane %v243, 4
    %v527 = vadd.f32 %v243, %v526
    %v528 = vrot.slane %v527, 2
    %v529 = vadd.f32 %v527, %v528
    %v530 = vrot.slane %v529, 1
    %v531 = vadd.f32 %v529, %v530
    %v532 = vrot.slane %v244, 4
    %v533 = vadd.f32 %v244, %v532
    %v534 = vrot.slane %v533, 2
    %v535 = vadd.f32 %v533, %v534
    %v536 = vrot.slane %v535, 1
    %v537 = vadd.f32 %v535, %v536
    %v538 = vrot.slane %v245, 4
    %v539 = vadd.f32 %v245, %v538
    %v540 = vrot.slane %v539, 2
    %v541 = vadd.f32 %v539, %v540
    %v542 = vrot.slane %v541, 1
    %v543 = vadd.f32 %v541, %v542
    %v544 = vrot.slane %v246, 4
    %v545 = vadd.f32 %v246, %v544
    %v546 = vrot.slane %v545, 2
    %v547 = vadd.f32 %v545, %v546
    %v548 = vrot.slane %v547, 1
    %v549 = vadd.f32 %v547, %v548
    %v550 = vrot.slane %v247, 4
    %v551 = vadd.f32 %v247, %v550
    %v552 = vrot.slane %v551, 2
    %v553 = vadd.f32 %v551, %v552
    %v554 = vrot.slane %v553, 1
    %v555 = vadd.f32 %v553, %v554
    %v556 = vrot.slane %v248, 4
    %v557 = vadd.f32 %v248, %v556
    %v558 = vrot.slane %v557, 2
    %v559 = vadd.f32 %v557, %v558
    %v560 = vrot.slane %v559, 1
    %v561 = vadd.f32 %v559, %v560
    %v562 = vrot.slane %v249, 4
    %v563 = vadd.f32 %v249, %v562
    %v564 = vrot.slane %v563, 2
    %v565 = vadd.f32 %v563, %v564
    %v566 = vrot.slane %v565, 1
    %v567 = vadd.f32 %v565, %v566
    %v568 = vrot.slane %v250, 4
    %v569 = vadd.f32 %v250, %v568
    %v570 = vrot.slane %v569, 2
    %v571 = vadd.f32 %v569, %v570
    %v572 = vrot.slane %v571, 1
    %v573 = vadd.f32 %v571, %v572
    %v574 = vrot.slane %v251, 4
    %v575 = vadd.f32 %v251, %v574
    %v576 = vrot.slane %v575, 2
    %v577 = vadd.f32 %v575, %v576
    %v578 = vrot.slane %v577, 1
    %v579 = vadd.f32 %v577, %v578
    %v580 = vrot.slane %v252, 4
    %v581 = vadd.f32 %v252, %v580
    %v582 = vrot.slane %v581, 2
    %v583 = vadd.f32 %v581, %v582
    %v584 = vrot.slane %v583, 1
    %v585 = vadd.f32 %v583, %v584
    %v586 = vrot.slane %v253, 4
    %v587 = vadd.f32 %v253, %v586
    %v588 = vrot.slane %v587, 2
    %v589 = vadd.f32 %v587, %v588
    %v590 = vrot.slane %v589, 1
    %v591 = vadd.f32 %v589, %v590
    %v592 = vrot.slane %v254, 4
    %v593 = vadd.f32 %v254, %v592
    %v594 = vrot.slane %v593, 2
    %v595 = vadd.f32 %v593, %v594
    %v596 = vrot.slane %v595, 1
    %v597 = vadd.f32 %v595, %v596
    %v598 = vrot.slane %v255, 4
    %v599 = vadd.f32 %v255, %v598
    %v600 = vrot.slane %v599, 2
    %v601 = vadd.f32 %v599, %v600
    %v602 = vrot.slane %v601, 1
    %v603 = vadd.f32 %v601, %v602
    %v604 = vrot.slane %v256, 4
    %v605 = vadd.f32 %v256, %v604
    %v606 = vrot.slane %v605, 2
    %v607 = vadd.f32 %v605, %v606
    %v608 = vrot.slane %v607, 1
    %v609 = vadd.f32 %v607, %v608
    %611 = vset.pattern.permute.xlu0 0
    %612 = vperm.xlu0 %611, %v314
    %v613 = vpop.permute.xlu0 %612
    %616 = vset.pattern.permute.xlu0 0
    %617 = vperm.xlu0 %616, %v315
    %v618 = vpop.permute.xlu0 %617
    %621 = vset.pattern.permute.xlu0 0
    %622 = vperm.xlu0 %621, %v316
    %v623 = vpop.permute.xlu0 %622
    %626 = vset.pattern.permute.xlu0 0
    %627 = vperm.xlu0 %626, %v317
    %v628 = vpop.permute.xlu0 %627
    %631 = vset.pattern.permute.xlu0 0
    %632 = vperm.xlu0 %631, %v318
    %v633 = vpop.permute.xlu0 %632
    %636 = vset.pattern.permute.xlu0 0
    %637 = vperm.xlu0 %636, %v319
    %v638 = vpop.permute.xlu0 %637
    %641 = vset.pattern.permute.xlu0 0
    %642 = vperm.xlu0 %641, %v320
    %v643 = vpop.permute.xlu0 %642
    %646 = vset.pattern.permute.xlu0 0
    %647 = vperm.xlu0 %646, %v321
    %v648 = vpop.permute.xlu0 %647
    %v650 = vrcp.pop %v613
    %v651 = vmul.f32 %v327, %v650
    %v652 = vmul.f32 %v333, %v650
    %v653 = vmul.f32 %v339, %v650
    %v654 = vmul.f32 %v345, %v650
    %v655 = vmul.f32 %v351, %v650
    %v656 = vmul.f32 %v357, %v650
    %v657 = vrcp.pop %v618
    %v658 = vmul.f32 %v363, %v657
    %v659 = vmul.f32 %v369, %v657
    %v660 = vmul.f32 %v375, %v657
    %v661 = vmul.f32 %v381, %v657
    %v662 = vmul.f32 %v387, %v657
    %v663 = vmul.f32 %v393, %v657
    %v664 = vrcp.pop %v623
    %v665 = vmul.f32 %v399, %v664
    %v666 = vmul.f32 %v405, %v664
    %v667 = vmul.f32 %v411, %v664
    %v668 = vmul.f32 %v417, %v664
    %v669 = vmul.f32 %v423, %v664
    %v670 = vmul.f32 %v429, %v664
    %v671 = vrcp.pop %v628
    %v672 = vmul.f32 %v435, %v671
    %v673 = vmul.f32 %v441, %v671
    %v674 = vmul.f32 %v447, %v671
    %v675 = vmul.f32 %v453, %v671
    %v676 = vmul.f32 %v459, %v671
    %v677 = vmul.f32 %v465, %v671
    %v678 = vrcp.pop %v633
    %v679 = vmul.f32 %v471, %v678
    %v680 = vmul.f32 %v477, %v678
    %v681 = vmul.f32 %v483, %v678
    %v682 = vmul.f32 %v489, %v678
    %v683 = vmul.f32 %v495, %v678
    %v684 = vmul.f32 %v501, %v678
    %v685 = vrcp.pop %v638
    %v686 = vmul.f32 %v507, %v685
    %v687 = vmul.f32 %v513, %v685
    %v688 = vmul.f32 %v519, %v685
    %v689 = vmul.f32 %v525, %v685
    %v690 = vmul.f32 %v531, %v685
    %v691 = vmul.f32 %v537, %v685
    %v692 = vrcp.pop %v643
    %v693 = vmul.f32 %v543, %v692
    %v694 = vmul.f32 %v549, %v692
    %v695 = vmul.f32 %v555, %v692
    %v696 = vmul.f32 %v561, %v692
    %v697 = vmul.f32 %v567, %v692
    %v698 = vmul.f32 %v573, %v692
    %v699 = vrcp.pop %v648
    %v700 = vmul.f32 %v579, %v699
    %v701 = vmul.f32 %v585, %v699
    %v702 = vmul.f32 %v591, %v699
    %v703 = vmul.f32 %v597, %v699
    %v704 = vmul.f32 %v603, %v699
    %v705 = vmul.f32 %v609, %v699
    %v706 = vpack.c.bf16 %v651, %v651
    %v707 = vpack.c.bf16 %v652, %v652
    %v708 = vpack.c.bf16 %v653, %v653
    %v709 = vpack.c.bf16 %v654, %v654
    %v710 = vpack.c.bf16 %v655, %v655
    %v711 = vpack.c.bf16 %v656, %v656
    %v712 = vpack.c.bf16 %v658, %v658
    %v713 = vpack.c.bf16 %v659, %v659
    %v714 = vpack.c.bf16 %v660, %v660
    %v715 = vpack.c.bf16 %v661, %v661
    %v716 = vpack.c.bf16 %v662, %v662
    %v717 = vpack.c.bf16 %v663, %v663
    %v718 = vpack.c.bf16 %v665, %v665
    %v719 = vpack.c.bf16 %v666, %v666
    %v720 = vpack.c.bf16 %v667, %v667
    %v721 = vpack.c.bf16 %v668, %v668
    %v722 = vpack.c.bf16 %v669, %v669
    %v723 = vpack.c.bf16 %v670, %v670
    %v724 = vpack.c.bf16 %v672, %v672
    %v725 = vpack.c.bf16 %v673, %v673
    %v726 = vpack.c.bf16 %v674, %v674
    %v727 = vpack.c.bf16 %v675, %v675
    %v728 = vpack.c.bf16 %v676, %v676
    %v729 = vpack.c.bf16 %v677, %v677
    %v730 = vpack.c.bf16 %v679, %v679
    %v731 = vpack.c.bf16 %v680, %v680
    %v732 = vpack.c.bf16 %v681, %v681
    %v733 = vpack.c.bf16 %v682, %v682
    %v734 = vpack.c.bf16 %v683, %v683
    %v735 = vpack.c.bf16 %v684, %v684
    %v736 = vpack.c.bf16 %v686, %v686
    %v737 = vpack.c.bf16 %v687, %v687
    %v738 = vpack.c.bf16 %v688, %v688
    %v739 = vpack.c.bf16 %v689, %v689
    %v740 = vpack.c.bf16 %v690, %v690
    %v741 = vpack.c.bf16 %v691, %v691
    %v742 = vpack.c.bf16 %v693, %v693
    %v743 = vpack.c.bf16 %v694, %v694
    %v744 = vpack.c.bf16 %v695, %v695
    %v745 = vpack.c.bf16 %v696, %v696
    %v746 = vpack.c.bf16 %v697, %v697
    %v747 = vpack.c.bf16 %v698, %v698
    %v748 = vpack.c.bf16 %v700, %v700
    %v749 = vpack.c.bf16 %v701, %v701
    %v750 = vpack.c.bf16 %v702, %v702
    %v751 = vpack.c.bf16 %v703, %v703
    %v752 = vpack.c.bf16 %v704, %v704
    %v753 = vpack.c.bf16 %v705, %v705
    %v754 = vld [vmem:[#allocation5] sm:$0xff]
    %v755 = vld [vmem:[#allocation5 + $0x8] sm:$0xff]
    %v756 = vld [vmem:[#allocation5 + $0x10] sm:$0xff]
    %v757 = vld [vmem:[#allocation5 + $0x18] sm:$0xff]
    %v758 = vld [vmem:[#allocation5 + $0x20] sm:$0xff]
    %v759 = vld [vmem:[#allocation5 + $0x28] sm:$0xff]
    %v760 = vld [vmem:[#allocation5 + $0x30] sm:$0xff]
    %v761 = vld [vmem:[#allocation5 + $0x38] sm:$0xff]
    %v762 = vld [vmem:[#allocation5 + $0x40] sm:$0xff]
    %v763 = vld [vmem:[#allocation5 + $0x48] sm:$0xff]
    %v764 = vld [vmem:[#allocation5 + $0x50] sm:$0xff]
    %v765 = vld [vmem:[#allocation5 + $0x58] sm:$0xff]
    %v766 = vld [vmem:[#allocation5 + $0x60] sm:$0xff]
    %v767 = vld [vmem:[#allocation5 + $0x68] sm:$0xff]
    %v768 = vld [vmem:[#allocation5 + $0x70] sm:$0xff]
    %v769 = vld [vmem:[#allocation5 + $0x78] sm:$0xff]
    %v770 = vld [vmem:[#allocation5 + $0x80] sm:$0xff]
    %v771 = vld [vmem:[#allocation5 + $0x88] sm:$0xff]
    %v772 = vld [vmem:[#allocation5 + $0x90] sm:$0xff]
    %v773 = vld [vmem:[#allocation5 + $0x98] sm:$0xff]
    %v774 = vld [vmem:[#allocation5 + $0xa0] sm:$0xff]
    %v775 = vld [vmem:[#allocation5 + $0xa8] sm:$0xff]
    %v776 = vld [vmem:[#allocation5 + $0xb0] sm:$0xff]
    %v777 = vld [vmem:[#allocation5 + $0xb8] sm:$0xff]
    %v778 = vld [vmem:[#allocation5 + $0xc0] sm:$0xff]
    %v779 = vld [vmem:[#allocation5 + $0xc8] sm:$0xff]
    %v780 = vld [vmem:[#allocation5 + $0xd0] sm:$0xff]
    %v781 = vld [vmem:[#allocation5 + $0xd8] sm:$0xff]
    %v782 = vld [vmem:[#allocation5 + $0xe0] sm:$0xff]
    %v783 = vld [vmem:[#allocation5 + $0xe8] sm:$0xff]
    %v784 = vld [vmem:[#allocation5 + $0xf0] sm:$0xff]
    %v785 = vld [vmem:[#allocation5 + $0xf8] sm:$0xff]
    %v786 = vld [vmem:[#allocation5 + $0x100] sm:$0xff]
    %v787 = vld [vmem:[#allocation5 + $0x108] sm:$0xff]
    %v788 = vld [vmem:[#allocation5 + $0x110] sm:$0xff]
    %v789 = vld [vmem:[#allocation5 + $0x118] sm:$0xff]
    %v790 = vld [vmem:[#allocation5 + $0x120] sm:$0xff]
    %v791 = vld [vmem:[#allocation5 + $0x128] sm:$0xff]
    %v792 = vld [vmem:[#allocation5 + $0x130] sm:$0xff]
    %v793 = vld [vmem:[#allocation5 + $0x138] sm:$0xff]
    %v794 = vld [vmem:[#allocation5 + $0x140] sm:$0xff]
    %v795 = vld [vmem:[#allocation5 + $0x148] sm:$0xff]
    %v796 = vld [vmem:[#allocation5 + $0x150] sm:$0xff]
    %v797 = vld [vmem:[#allocation5 + $0x158] sm:$0xff]
    %v798 = vld [vmem:[#allocation5 + $0x160] sm:$0xff]
    %v799 = vld [vmem:[#allocation5 + $0x168] sm:$0xff]
    %v800 = vld [vmem:[#allocation5 + $0x170] sm:$0xff]
    %v801 = vld [vmem:[#allocation5 + $0x178] sm:$0xff]
    %v802 = vld [vmem:[#allocation5 + $0x180] sm:$0xff]
    %v803 = vld [vmem:[#allocation5 + $0x188] sm:$0xff]
    %v804 = vld [vmem:[#allocation5 + $0x190] sm:$0xff]
    %v805 = vld [vmem:[#allocation5 + $0x198] sm:$0xff]
    %v806 = vld [vmem:[#allocation5 + $0x1a0] sm:$0xff]
    %v807 = vld [vmem:[#allocation5 + $0x1a8] sm:$0xff]
    %v808 = vld [vmem:[#allocation5 + $0x1b0] sm:$0xff]
    %v809 = vld [vmem:[#allocation5 + $0x1b8] sm:$0xff]
    %v810 = vld [vmem:[#allocation5 + $0x1c0] sm:$0xff]
    %v811 = vld [vmem:[#allocation5 + $0x1c8] sm:$0xff]
    %v812 = vld [vmem:[#allocation5 + $0x1d0] sm:$0xff]
    %v813 = vld [vmem:[#allocation5 + $0x1d8] sm:$0xff]
    %v814 = vld [vmem:[#allocation5 + $0x1e0] sm:$0xff]
    %v815 = vld [vmem:[#allocation5 + $0x1e8] sm:$0xff]
    %v816 = vld [vmem:[#allocation5 + $0x1f0] sm:$0xff]
    %v817 = vld [vmem:[#allocation5 + $0x1f8] sm:$0xff]
    %v818 = vld [vmem:[#allocation5 + $0x200] sm:$0xff]
    %v819 = vld [vmem:[#allocation5 + $0x208] sm:$0xff]
    %v820 = vld [vmem:[#allocation5 + $0x210] sm:$0xff]
    %v821 = vld [vmem:[#allocation5 + $0x218] sm:$0xff]
    %v822 = vld [vmem:[#allocation5 + $0x220] sm:$0xff]
    %v823 = vld [vmem:[#allocation5 + $0x228] sm:$0xff]
    %v824 = vld [vmem:[#allocation5 + $0x230] sm:$0xff]
    %v825 = vld [vmem:[#allocation5 + $0x238] sm:$0xff]
    %v826 = vld [vmem:[#allocation5 + $0x240] sm:$0xff]
    %v827 = vld [vmem:[#allocation5 + $0x248] sm:$0xff]
    %v828 = vld [vmem:[#allocation5 + $0x250] sm:$0xff]
    %v829 = vld [vmem:[#allocation5 + $0x258] sm:$0xff]
    %v830 = vld [vmem:[#allocation5 + $0x260] sm:$0xff]
    %v831 = vld [vmem:[#allocation5 + $0x268] sm:$0xff]
    %v832 = vld [vmem:[#allocation5 + $0x270] sm:$0xff]
    %v833 = vld [vmem:[#allocation5 + $0x278] sm:$0xff]
    %v834 = vld [vmem:[#allocation5 + $0x280] sm:$0xff]
    %v835 = vld [vmem:[#allocation5 + $0x288] sm:$0xff]
    %v836 = vld [vmem:[#allocation5 + $0x290] sm:$0xff]
    %v837 = vld [vmem:[#allocation5 + $0x298] sm:$0xff]
    %v838 = vld [vmem:[#allocation5 + $0x2a0] sm:$0xff]
    %v839 = vld [vmem:[#allocation5 + $0x2a8] sm:$0xff]
    %v840 = vld [vmem:[#allocation5 + $0x2b0] sm:$0xff]
    %v841 = vld [vmem:[#allocation5 + $0x2b8] sm:$0xff]
    %v842 = vld [vmem:[#allocation5 + $0x2c0] sm:$0xff]
    %v843 = vld [vmem:[#allocation5 + $0x2c8] sm:$0xff]
    %v844 = vld [vmem:[#allocation5 + $0x2d0] sm:$0xff]
    %v845 = vld [vmem:[#allocation5 + $0x2d8] sm:$0xff]
    %v846 = vld [vmem:[#allocation5 + $0x2e0] sm:$0xff]
    %v847 = vld [vmem:[#allocation5 + $0x2e8] sm:$0xff]
    %v848 = vld [vmem:[#allocation5 + $0x2f0] sm:$0xff]
    %v849 = vld [vmem:[#allocation5 + $0x2f8] sm:$0xff]
    %v850 = vld [vmem:[#allocation5 + $0x300] sm:$0xff]
    %v851 = vld [vmem:[#allocation5 + $0x308] sm:$0xff]
    %v852 = vld [vmem:[#allocation5 + $0x310] sm:$0xff]
    %v853 = vld [vmem:[#allocation5 + $0x318] sm:$0xff]
    %v854 = vld [vmem:[#allocation5 + $0x320] sm:$0xff]
    %v855 = vld [vmem:[#allocation5 + $0x328] sm:$0xff]
    %v856 = vld [vmem:[#allocation5 + $0x330] sm:$0xff]
    %v857 = vld [vmem:[#allocation5 + $0x338] sm:$0xff]
    %v858 = vld [vmem:[#allocation5 + $0x340] sm:$0xff]
    %v859 = vld [vmem:[#allocation5 + $0x348] sm:$0xff]
    %v860 = vld [vmem:[#allocation5 + $0x350] sm:$0xff]
    %v861 = vld [vmem:[#allocation5 + $0x358] sm:$0xff]
    %v862 = vld [vmem:[#allocation5 + $0x360] sm:$0xff]
    %v863 = vld [vmem:[#allocation5 + $0x368] sm:$0xff]
    %v864 = vld [vmem:[#allocation5 + $0x370] sm:$0xff]
    %v865 = vld [vmem:[#allocation5 + $0x378] sm:$0xff]
    %v866 = vld [vmem:[#allocation5 + $0x380] sm:$0xff]
    %v867 = vld [vmem:[#allocation5 + $0x388] sm:$0xff]
    %v868 = vld [vmem:[#allocation5 + $0x390] sm:$0xff]
    %v869 = vld [vmem:[#allocation5 + $0x398] sm:$0xff]
    %v870 = vld [vmem:[#allocation5 + $0x3a0] sm:$0xff]
    %v871 = vld [vmem:[#allocation5 + $0x3a8] sm:$0xff]
    %v872 = vld [vmem:[#allocation5 + $0x3b0] sm:$0xff]
    %v873 = vld [vmem:[#allocation5 + $0x3b8] sm:$0xff]
    %v874 = vld [vmem:[#allocation5 + $0x3c0] sm:$0xff]
    %v875 = vld [vmem:[#allocation5 + $0x3c8] sm:$0xff]
    %v876 = vld [vmem:[#allocation5 + $0x3d0] sm:$0xff]
    %v877 = vld [vmem:[#allocation5 + $0x3d8] sm:$0xff]
    %v878 = vld [vmem:[#allocation5 + $0x3e0] sm:$0xff]
    %v879 = vld [vmem:[#allocation5 + $0x3e8] sm:$0xff]
    %v880 = vld [vmem:[#allocation5 + $0x3f0] sm:$0xff]
    %v881 = vld [vmem:[#allocation5 + $0x3f8] sm:$0xff]
    %v882 = vld [vmem:[#allocation5 + $0x400] sm:$0xff]
    %v883 = vld [vmem:[#allocation5 + $0x408] sm:$0xff]
    %v884 = vld [vmem:[#allocation5 + $0x410] sm:$0xff]
    %v885 = vld [vmem:[#allocation5 + $0x418] sm:$0xff]
    %v886 = vld [vmem:[#allocation5 + $0x420] sm:$0xff]
    %v887 = vld [vmem:[#allocation5 + $0x428] sm:$0xff]
    %v888 = vld [vmem:[#allocation5 + $0x430] sm:$0xff]
    %v889 = vld [vmem:[#allocation5 + $0x438] sm:$0xff]
    %v890 = vld [vmem:[#allocation5 + $0x440] sm:$0xff]
    %v891 = vld [vmem:[#allocation5 + $0x448] sm:$0xff]
    %v892 = vld [vmem:[#allocation5 + $0x450] sm:$0xff]
    %v893 = vld [vmem:[#allocation5 + $0x458] sm:$0xff]
    %v894 = vld [vmem:[#allocation5 + $0x460] sm:$0xff]
    %v895 = vld [vmem:[#allocation5 + $0x468] sm:$0xff]
    %v896 = vld [vmem:[#allocation5 + $0x470] sm:$0xff]
    %v897 = vld [vmem:[#allocation5 + $0x478] sm:$0xff]
    %v898 = vld [vmem:[#allocation5 + $0x480] sm:$0xff]
    %v899 = vld [vmem:[#allocation5 + $0x488] sm:$0xff]
    %v900 = vld [vmem:[#allocation5 + $0x490] sm:$0xff]
    %v901 = vld [vmem:[#allocation5 + $0x498] sm:$0xff]
    %v902 = vld [vmem:[#allocation5 + $0x4a0] sm:$0xff]
    %v903 = vld [vmem:[#allocation5 + $0x4a8] sm:$0xff]
    %v904 = vld [vmem:[#allocation5 + $0x4b0] sm:$0xff]
    %v905 = vld [vmem:[#allocation5 + $0x4b8] sm:$0xff]
    %v906 = vld [vmem:[#allocation5 + $0x4c0] sm:$0xff]
    %v907 = vld [vmem:[#allocation5 + $0x4c8] sm:$0xff]
    %v908 = vld [vmem:[#allocation5 + $0x4d0] sm:$0xff]
    %v909 = vld [vmem:[#allocation5 + $0x4d8] sm:$0xff]
    %v910 = vld [vmem:[#allocation5 + $0x4e0] sm:$0xff]
    %v911 = vld [vmem:[#allocation5 + $0x4e8] sm:$0xff]
    %v912 = vld [vmem:[#allocation5 + $0x4f0] sm:$0xff]
    %v913 = vld [vmem:[#allocation5 + $0x4f8] sm:$0xff]
    %v914 = vld [vmem:[#allocation5 + $0x500] sm:$0xff]
    %v915 = vld [vmem:[#allocation5 + $0x508] sm:$0xff]
    %v916 = vld [vmem:[#allocation5 + $0x510] sm:$0xff]
    %v917 = vld [vmem:[#allocation5 + $0x518] sm:$0xff]
    %v918 = vld [vmem:[#allocation5 + $0x520] sm:$0xff]
    %v919 = vld [vmem:[#allocation5 + $0x528] sm:$0xff]
    %v920 = vld [vmem:[#allocation5 + $0x530] sm:$0xff]
    %v921 = vld [vmem:[#allocation5 + $0x538] sm:$0xff]
    %v922 = vld [vmem:[#allocation5 + $0x540] sm:$0xff]
    %v923 = vld [vmem:[#allocation5 + $0x548] sm:$0xff]
    %v924 = vld [vmem:[#allocation5 + $0x550] sm:$0xff]
    %v925 = vld [vmem:[#allocation5 + $0x558] sm:$0xff]
    %v926 = vld [vmem:[#allocation5 + $0x560] sm:$0xff]
    %v927 = vld [vmem:[#allocation5 + $0x568] sm:$0xff]
    %v928 = vld [vmem:[#allocation5 + $0x570] sm:$0xff]
    %v929 = vld [vmem:[#allocation5 + $0x578] sm:$0xff]
    %v930 = vld [vmem:[#allocation5 + $0x580] sm:$0xff]
    %v931 = vld [vmem:[#allocation5 + $0x588] sm:$0xff]
    %v932 = vld [vmem:[#allocation5 + $0x590] sm:$0xff]
    %v933 = vld [vmem:[#allocation5 + $0x598] sm:$0xff]
    %v934 = vld [vmem:[#allocation5 + $0x5a0] sm:$0xff]
    %v935 = vld [vmem:[#allocation5 + $0x5a8] sm:$0xff]
    %v936 = vld [vmem:[#allocation5 + $0x5b0] sm:$0xff]
    %v937 = vld [vmem:[#allocation5 + $0x5b8] sm:$0xff]
    %v938 = vld [vmem:[#allocation5 + $0x5c0] sm:$0xff]
    %v939 = vld [vmem:[#allocation5 + $0x5c8] sm:$0xff]
    %v940 = vld [vmem:[#allocation5 + $0x5d0] sm:$0xff]
    %v941 = vld [vmem:[#allocation5 + $0x5d8] sm:$0xff]
    %v942 = vld [vmem:[#allocation5 + $0x5e0] sm:$0xff]
    %v943 = vld [vmem:[#allocation5 + $0x5e8] sm:$0xff]
    %v944 = vld [vmem:[#allocation5 + $0x5f0] sm:$0xff]
    %v945 = vld [vmem:[#allocation5 + $0x5f8] sm:$0xff]
    %v946 = vld [vmem:[#allocation5 + $0x600] sm:$0xff]
    %v947 = vld [vmem:[#allocation5 + $0x608] sm:$0xff]
    %v948 = vld [vmem:[#allocation5 + $0x610] sm:$0xff]
    %v949 = vld [vmem:[#allocation5 + $0x618] sm:$0xff]
    %v950 = vld [vmem:[#allocation5 + $0x620] sm:$0xff]
    %v951 = vld [vmem:[#allocation5 + $0x628] sm:$0xff]
    %v952 = vld [vmem:[#allocation5 + $0x630] sm:$0xff]
    %v953 = vld [vmem:[#allocation5 + $0x638] sm:$0xff]
    %v954 = vld [vmem:[#allocation5 + $0x640] sm:$0xff]
    %v955 = vld [vmem:[#allocation5 + $0x648] sm:$0xff]
    %v956 = vld [vmem:[#allocation5 + $0x650] sm:$0xff]
    %v957 = vld [vmem:[#allocation5 + $0x658] sm:$0xff]
    %v958 = vld [vmem:[#allocation5 + $0x660] sm:$0xff]
    %v959 = vld [vmem:[#allocation5 + $0x668] sm:$0xff]
    %v960 = vld [vmem:[#allocation5 + $0x670] sm:$0xff]
    %v961 = vld [vmem:[#allocation5 + $0x678] sm:$0xff]
    %v962 = vld [vmem:[#allocation5 + $0x680] sm:$0xff]
    %v963 = vld [vmem:[#allocation5 + $0x688] sm:$0xff]
    %v964 = vld [vmem:[#allocation5 + $0x690] sm:$0xff]
    %v965 = vld [vmem:[#allocation5 + $0x698] sm:$0xff]
    %v966 = vld [vmem:[#allocation5 + $0x6a0] sm:$0xff]
    %v967 = vld [vmem:[#allocation5 + $0x6a8] sm:$0xff]
    %v968 = vld [vmem:[#allocation5 + $0x6b0] sm:$0xff]
    %v969 = vld [vmem:[#allocation5 + $0x6b8] sm:$0xff]
    %v970 = vld [vmem:[#allocation5 + $0x6c0] sm:$0xff]
    %v971 = vld [vmem:[#allocation5 + $0x6c8] sm:$0xff]
    %v972 = vld [vmem:[#allocation5 + $0x6d0] sm:$0xff]
    %v973 = vld [vmem:[#allocation5 + $0x6d8] sm:$0xff]
    %v974 = vld [vmem:[#allocation5 + $0x6e0] sm:$0xff]
    %v975 = vld [vmem:[#allocation5 + $0x6e8] sm:$0xff]
    %v976 = vld [vmem:[#allocation5 + $0x6f0] sm:$0xff]
    %v977 = vld [vmem:[#allocation5 + $0x6f8] sm:$0xff]
    %v978 = vld [vmem:[#allocation5 + $0x700] sm:$0xff]
    %v979 = vld [vmem:[#allocation5 + $0x708] sm:$0xff]
    %v980 = vld [vmem:[#allocation5 + $0x710] sm:$0xff]
    %v981 = vld [vmem:[#allocation5 + $0x718] sm:$0xff]
    %v982 = vld [vmem:[#allocation5 + $0x720] sm:$0xff]
    %v983 = vld [vmem:[#allocation5 + $0x728] sm:$0xff]
    %v984 = vld [vmem:[#allocation5 + $0x730] sm:$0xff]
    %v985 = vld [vmem:[#allocation5 + $0x738] sm:$0xff]
    %v986 = vld [vmem:[#allocation5 + $0x740] sm:$0xff]
    %v987 = vld [vmem:[#allocation5 + $0x748] sm:$0xff]
    %v988 = vld [vmem:[#allocation5 + $0x750] sm:$0xff]
    %v989 = vld [vmem:[#allocation5 + $0x758] sm:$0xff]
    %v990 = vld [vmem:[#allocation5 + $0x760] sm:$0xff]
    %v991 = vld [vmem:[#allocation5 + $0x768] sm:$0xff]
    %v992 = vld [vmem:[#allocation5 + $0x770] sm:$0xff]
    %v993 = vld [vmem:[#allocation5 + $0x778] sm:$0xff]
    %v994 = vld [vmem:[#allocation5 + $0x780] sm:$0xff]
    %v995 = vld [vmem:[#allocation5 + $0x788] sm:$0xff]
    %v996 = vld [vmem:[#allocation5 + $0x790] sm:$0xff]
    %v997 = vld [vmem:[#allocation5 + $0x798] sm:$0xff]
    %v998 = vld [vmem:[#allocation5 + $0x7a0] sm:$0xff]
    %v999 = vld [vmem:[#allocation5 + $0x7a8] sm:$0xff]
    %v1000 = vld [vmem:[#allocation5 + $0x7b0] sm:$0xff]
    %v1001 = vld [vmem:[#allocation5 + $0x7b8] sm:$0xff]
    %v1002 = vld [vmem:[#allocation5 + $0x7c0] sm:$0xff]
    %v1003 = vld [vmem:[#allocation5 + $0x7c8] sm:$0xff]
    %v1004 = vld [vmem:[#allocation5 + $0x7d0] sm:$0xff]
    %v1005 = vld [vmem:[#allocation5 + $0x7d8] sm:$0xff]
    %v1006 = vld [vmem:[#allocation5 + $0x7e0] sm:$0xff]
    %v1007 = vld [vmem:[#allocation5 + $0x7e8] sm:$0xff]
    %v1008 = vld [vmem:[#allocation5 + $0x7f0] sm:$0xff]
    %v1009 = vld [vmem:[#allocation5 + $0x7f8] sm:$0xff]
    %v1010 = vld [vmem:[#allocation5 + $0x800] sm:$0xff]
    %v1011 = vld [vmem:[#allocation5 + $0x808] sm:$0xff]
    %v1012 = vld [vmem:[#allocation5 + $0x810] sm:$0xff]
    %v1013 = vld [vmem:[#allocation5 + $0x818] sm:$0xff]
    %v1014 = vld [vmem:[#allocation5 + $0x820] sm:$0xff]
    %v1015 = vld [vmem:[#allocation5 + $0x828] sm:$0xff]
    %v1016 = vld [vmem:[#allocation5 + $0x830] sm:$0xff]
    %v1017 = vld [vmem:[#allocation5 + $0x838] sm:$0xff]
    %v1018 = vld [vmem:[#allocation5 + $0x840] sm:$0xff]
    %v1019 = vld [vmem:[#allocation5 + $0x848] sm:$0xff]
    %v1020 = vld [vmem:[#allocation5 + $0x850] sm:$0xff]
    %v1021 = vld [vmem:[#allocation5 + $0x858] sm:$0xff]
    %v1022 = vld [vmem:[#allocation5 + $0x860] sm:$0xff]
    %v1023 = vld [vmem:[#allocation5 + $0x868] sm:$0xff]
    %v1024 = vld [vmem:[#allocation5 + $0x870] sm:$0xff]
    %v1025 = vld [vmem:[#allocation5 + $0x878] sm:$0xff]
    %v1026 = vld [vmem:[#allocation5 + $0x880] sm:$0xff]
    %v1027 = vld [vmem:[#allocation5 + $0x888] sm:$0xff]
    %v1028 = vld [vmem:[#allocation5 + $0x890] sm:$0xff]
    %v1029 = vld [vmem:[#allocation5 + $0x898] sm:$0xff]
    %v1030 = vld [vmem:[#allocation5 + $0x8a0] sm:$0xff]
    %v1031 = vld [vmem:[#allocation5 + $0x8a8] sm:$0xff]
    %v1032 = vld [vmem:[#allocation5 + $0x8b0] sm:$0xff]
    %v1033 = vld [vmem:[#allocation5 + $0x8b8] sm:$0xff]
    %v1034 = vld [vmem:[#allocation5 + $0x8c0] sm:$0xff]
    %v1035 = vld [vmem:[#allocation5 + $0x8c8] sm:$0xff]
    %v1036 = vld [vmem:[#allocation5 + $0x8d0] sm:$0xff]
    %v1037 = vld [vmem:[#allocation5 + $0x8d8] sm:$0xff]
    %v1038 = vld [vmem:[#allocation5 + $0x8e0] sm:$0xff]
    %v1039 = vld [vmem:[#allocation5 + $0x8e8] sm:$0xff]
    %v1040 = vld [vmem:[#allocation5 + $0x8f0] sm:$0xff]
    %v1041 = vld [vmem:[#allocation5 + $0x8f8] sm:$0xff]
    %v1042 = vld [vmem:[#allocation7] sm:$0x3f]
    %v1044 = vlaneseq
    %v1045 = vshrl.u32 %v1044, 7
    %v1046 = vsub.s32 0, %v1045
    %v1047 = vrot.slane %v1042, %v1046
    %v1048 = vlaneseq
    %v1049 = vshrl.u32 %v1048, 7
    %v1050 = vsub.s32 1, %v1049
    %v1051 = vrot.slane %v1042, %v1050
    %v1052 = vlaneseq
    %v1053 = vshrl.u32 %v1052, 7
    %v1054 = vsub.s32 2, %v1053
    %v1055 = vrot.slane %v1042, %v1054
    %v1056 = vlaneseq
    %v1057 = vshrl.u32 %v1056, 7
    %v1058 = vsub.s32 3, %v1057
    %v1059 = vrot.slane %v1042, %v1058
    %v1060 = vlaneseq
    %v1061 = vshrl.u32 %v1060, 7
    %v1062 = vsub.s32 4, %v1061
    %v1063 = vrot.slane %v1042, %v1062
    %v1064 = vlaneseq
    %v1065 = vshrl.u32 %v1064, 7
    %v1066 = vsub.s32 5, %v1065
    %v1067 = vrot.slane %v1042, %v1066
    %v1122 = vunpack.c.l.b16 %v706
    %v1123 = vunpack.c.l.b16 %v707
    %v1124 = vunpack.c.l.b16 %v708
    %v1125 = vunpack.c.l.b16 %v709
    %v1126 = vunpack.c.l.b16 %v710
    %v1127 = vunpack.c.l.b16 %v711
    %v1128 = vunpack.c.l.b16 %v712
    %v1129 = vunpack.c.l.b16 %v713
    %v1130 = vunpack.c.l.b16 %v714
    %v1131 = vunpack.c.l.b16 %v715
    %v1132 = vunpack.c.l.b16 %v716
    %v1133 = vunpack.c.l.b16 %v717
    %v1134 = vunpack.c.l.b16 %v718
    %v1135 = vunpack.c.l.b16 %v719
    %v1136 = vunpack.c.l.b16 %v720
    %v1137 = vunpack.c.l.b16 %v721
    %v1138 = vunpack.c.l.b16 %v722
    %v1139 = vunpack.c.l.b16 %v723
    %v1140 = vunpack.c.l.b16 %v724
    %v1141 = vunpack.c.l.b16 %v725
    %v1142 = vunpack.c.l.b16 %v726
    %v1143 = vunpack.c.l.b16 %v727
    %v1144 = vunpack.c.l.b16 %v728
    %v1145 = vunpack.c.l.b16 %v729
    %v1146 = vunpack.c.l.b16 %v730
    %v1147 = vunpack.c.l.b16 %v731
    %v1148 = vunpack.c.l.b16 %v732
    %v1149 = vunpack.c.l.b16 %v733
    %v1150 = vunpack.c.l.b16 %v734
    %v1151 = vunpack.c.l.b16 %v735
    %v1152 = vunpack.c.l.b16 %v736
    %v1153 = vunpack.c.l.b16 %v737
    %v1154 = vunpack.c.l.b16 %v738
    %v1155 = vunpack.c.l.b16 %v739
    %v1156 = vunpack.c.l.b16 %v740
    %v1157 = vunpack.c.l.b16 %v741
    %v1158 = vunpack.c.l.b16 %v742
    %v1159 = vunpack.c.l.b16 %v743
    %v1160 = vunpack.c.l.b16 %v744
    %v1161 = vunpack.c.l.b16 %v745
    %v1162 = vunpack.c.l.b16 %v746
    %v1163 = vunpack.c.l.b16 %v747
    %v1164 = vunpack.c.l.b16 %v748
    %v1165 = vunpack.c.l.b16 %v749
    %v1166 = vunpack.c.l.b16 %v750
    %v1167 = vunpack.c.l.b16 %v751
    %v1168 = vunpack.c.l.b16 %v752
    %v1169 = vunpack.c.l.b16 %v753
    %vm1170 = vcmask 1041409
    %v1171 = vsel %vm1170, %v1128, %v1122
    %vm1172 = vcmask 1042434
    %v1173 = vsel %vm1172, %v1134, %v1171
    %vm1174 = vcmask 1043459
    %v1175 = vsel %vm1174, %v1140, %v1173
    %vm1176 = vcmask 1044484
    %v1177 = vsel %vm1176, %v1146, %v1175
    %vm1178 = vcmask 1045509
    %v1179 = vsel %vm1178, %v1152, %v1177
    %vm1180 = vcmask 1046534
    %v1181 = vsel %vm1180, %v1158, %v1179
    %vm1182 = vcmask 1047559
    %v1183 = vsel %vm1182, %v1164, %v1181
    %v1184 = vsel %vm1170, %v1129, %v1123
    %v1185 = vsel %vm1172, %v1135, %v1184
    %v1186 = vsel %vm1174, %v1141, %v1185
    %v1187 = vsel %vm1176, %v1147, %v1186
    %v1188 = vsel %vm1178, %v1153, %v1187
    %v1189 = vsel %vm1180, %v1159, %v1188
    %v1190 = vsel %vm1182, %v1165, %v1189
    %v1191 = vsel %vm1170, %v1130, %v1124
    %v1192 = vsel %vm1172, %v1136, %v1191
    %v1193 = vsel %vm1174, %v1142, %v1192
    %v1194 = vsel %vm1176, %v1148, %v1193
    %v1195 = vsel %vm1178, %v1154, %v1194
    %v1196 = vsel %vm1180, %v1160, %v1195
    %v1197 = vsel %vm1182, %v1166, %v1196
    %v1198 = vsel %vm1170, %v1131, %v1125
    %v1199 = vsel %vm1172, %v1137, %v1198
    %v1200 = vsel %vm1174, %v1143, %v1199
    %v1201 = vsel %vm1176, %v1149, %v1200
    %v1202 = vsel %vm1178, %v1155, %v1201
    %v1203 = vsel %vm1180, %v1161, %v1202
    %v1204 = vsel %vm1182, %v1167, %v1203
    %v1205 = vsel %vm1170, %v1132, %v1126
    %v1206 = vsel %vm1172, %v1138, %v1205
    %v1207 = vsel %vm1174, %v1144, %v1206
    %v1208 = vsel %vm1176, %v1150, %v1207
    %v1209 = vsel %vm1178, %v1156, %v1208
    %v1210 = vsel %vm1180, %v1162, %v1209
    %v1211 = vsel %vm1182, %v1168, %v1210
    %v1212 = vsel %vm1170, %v1133, %v1127
    %v1213 = vsel %vm1172, %v1139, %v1212
    %v1214 = vsel %vm1174, %v1145, %v1213
    %v1215 = vsel %vm1176, %v1151, %v1214
    %v1216 = vsel %vm1178, %v1157, %v1215
    %v1217 = vsel %vm1180, %v1163, %v1216
    %v1218 = vsel %vm1182, %v1169, %v1217
    %v1219 = vpack.c.b16 %v1183, %v1183
    %v1220 = vpack.c.b16 %v1190, %v1190
    %v1221 = vpack.c.b16 %v1197, %v1197
    %v1222 = vpack.c.b16 %v1204, %v1204
    %v1223 = vpack.c.b16 %v1211, %v1211
    %v1224 = vpack.c.b16 %v1218, %v1218
    %v1519 = vunpack.c.l.b16 %v754
    %v1520 = vunpack.c.h.b16 %v754
    %v1521 = vunpack.c.l.b16 %v755
    %v1522 = vunpack.c.h.b16 %v755
    %v1523 = vunpack.c.l.b16 %v756
    %v1524 = vunpack.c.h.b16 %v756
    %v1525 = vunpack.c.l.b16 %v757
    %v1526 = vunpack.c.h.b16 %v757
    %v1527 = vunpack.c.l.b16 %v758
    %v1528 = vunpack.c.h.b16 %v758
    %v1529 = vunpack.c.l.b16 %v759
    %v1530 = vunpack.c.h.b16 %v759
    %v1531 = vunpack.c.l.b16 %v760
    %v1532 = vunpack.c.h.b16 %v760
    %v1533 = vunpack.c.l.b16 %v761
    %v1534 = vunpack.c.h.b16 %v761
    %v1535 = vunpack.c.l.b16 %v762
    %v1536 = vunpack.c.h.b16 %v762
    %v1537 = vunpack.c.l.b16 %v763
    %v1538 = vunpack.c.h.b16 %v763
    %v1539 = vunpack.c.l.b16 %v764
    %v1540 = vunpack.c.h.b16 %v764
    %v1541 = vunpack.c.l.b16 %v765
    %v1542 = vunpack.c.h.b16 %v765
    %v1543 = vunpack.c.l.b16 %v766
    %v1544 = vunpack.c.h.b16 %v766
    %v1545 = vunpack.c.l.b16 %v767
    %v1546 = vunpack.c.h.b16 %v767
    %v1547 = vunpack.c.l.b16 %v768
    %v1548 = vunpack.c.h.b16 %v768
    %v1549 = vunpack.c.l.b16 %v769
    %v1550 = vunpack.c.h.b16 %v769
    %v1551 = vunpack.c.l.b16 %v770
    %v1552 = vunpack.c.h.b16 %v770
    %v1553 = vunpack.c.l.b16 %v771
    %v1554 = vunpack.c.h.b16 %v771
    %v1555 = vunpack.c.l.b16 %v772
    %v1556 = vunpack.c.h.b16 %v772
    %v1557 = vunpack.c.l.b16 %v773
    %v1558 = vunpack.c.h.b16 %v773
    %v1559 = vunpack.c.l.b16 %v774
    %v1560 = vunpack.c.h.b16 %v774
    %v1561 = vunpack.c.l.b16 %v775
    %v1562 = vunpack.c.h.b16 %v775
    %v1563 = vunpack.c.l.b16 %v776
    %v1564 = vunpack.c.h.b16 %v776
    %v1565 = vunpack.c.l.b16 %v777
    %v1566 = vunpack.c.h.b16 %v777
    %v1567 = vunpack.c.l.b16 %v778
    %v1568 = vunpack.c.h.b16 %v778
    %v1569 = vunpack.c.l.b16 %v779
    %v1570 = vunpack.c.h.b16 %v779
    %v1571 = vunpack.c.l.b16 %v780
    %v1572 = vunpack.c.h.b16 %v780
    %v1573 = vunpack.c.l.b16 %v781
    %v1574 = vunpack.c.h.b16 %v781
    %v1575 = vunpack.c.l.b16 %v782
    %v1576 = vunpack.c.h.b16 %v782
    %v1577 = vunpack.c.l.b16 %v783
    %v1578 = vunpack.c.h.b16 %v783
    %v1579 = vunpack.c.l.b16 %v784
    %v1580 = vunpack.c.h.b16 %v784
    %v1581 = vunpack.c.l.b16 %v785
    %v1582 = vunpack.c.h.b16 %v785
    %v1583 = vunpack.c.l.b16 %v786
    %v1584 = vunpack.c.h.b16 %v786
    %v1585 = vunpack.c.l.b16 %v787
    %v1586 = vunpack.c.h.b16 %v787
    %v1587 = vunpack.c.l.b16 %v788
    %v1588 = vunpack.c.h.b16 %v788
    %v1589 = vunpack.c.l.b16 %v789
    %v1590 = vunpack.c.h.b16 %v789
    %v1591 = vunpack.c.l.b16 %v790
    %v1592 = vunpack.c.h.b16 %v790
    %v1593 = vunpack.c.l.b16 %v791
    %v1594 = vunpack.c.h.b16 %v791
    %v1595 = vunpack.c.l.b16 %v792
    %v1596 = vunpack.c.h.b16 %v792
    %v1597 = vunpack.c.l.b16 %v793
    %v1598 = vunpack.c.h.b16 %v793
    %v1599 = vunpack.c.l.b16 %v794
    %v1600 = vunpack.c.h.b16 %v794
    %v1601 = vunpack.c.l.b16 %v795
    %v1602 = vunpack.c.h.b16 %v795
    %v1603 = vunpack.c.l.b16 %v796
    %v1604 = vunpack.c.h.b16 %v796
    %v1605 = vunpack.c.l.b16 %v797
    %v1606 = vunpack.c.h.b16 %v797
    %v1607 = vunpack.c.l.b16 %v798
    %v1608 = vunpack.c.h.b16 %v798
    %v1609 = vunpack.c.l.b16 %v799
    %v1610 = vunpack.c.h.b16 %v799
    %v1611 = vunpack.c.l.b16 %v800
    %v1612 = vunpack.c.h.b16 %v800
    %v1613 = vunpack.c.l.b16 %v801
    %v1614 = vunpack.c.h.b16 %v801
    %v1615 = vunpack.c.l.b16 %v802
    %v1616 = vunpack.c.h.b16 %v802
    %v1617 = vunpack.c.l.b16 %v803
    %v1618 = vunpack.c.h.b16 %v803
    %v1619 = vunpack.c.l.b16 %v804
    %v1620 = vunpack.c.h.b16 %v804
    %v1621 = vunpack.c.l.b16 %v805
    %v1622 = vunpack.c.h.b16 %v805
    %v1623 = vunpack.c.l.b16 %v806
    %v1624 = vunpack.c.h.b16 %v806
    %v1625 = vunpack.c.l.b16 %v807
    %v1626 = vunpack.c.h.b16 %v807
    %v1627 = vunpack.c.l.b16 %v808
    %v1628 = vunpack.c.h.b16 %v808
    %v1629 = vunpack.c.l.b16 %v809
    %v1630 = vunpack.c.h.b16 %v809
    %v1631 = vunpack.c.l.b16 %v810
    %v1632 = vunpack.c.h.b16 %v810
    %v1633 = vunpack.c.l.b16 %v811
    %v1634 = vunpack.c.h.b16 %v811
    %v1635 = vunpack.c.l.b16 %v812
    %v1636 = vunpack.c.h.b16 %v812
    %v1637 = vunpack.c.l.b16 %v813
    %v1638 = vunpack.c.h.b16 %v813
    %v1639 = vunpack.c.l.b16 %v814
    %v1640 = vunpack.c.h.b16 %v814
    %v1641 = vunpack.c.l.b16 %v815
    %v1642 = vunpack.c.h.b16 %v815
    %v1643 = vunpack.c.l.b16 %v816
    %v1644 = vunpack.c.h.b16 %v816
    %v1645 = vunpack.c.l.b16 %v817
    %v1646 = vunpack.c.h.b16 %v817
    %v1647 = vunpack.c.l.b16 %v818
    %v1648 = vunpack.c.h.b16 %v818
    %v1649 = vunpack.c.l.b16 %v819
    %v1650 = vunpack.c.h.b16 %v819
    %v1651 = vunpack.c.l.b16 %v820
    %v1652 = vunpack.c.h.b16 %v820
    %v1653 = vunpack.c.l.b16 %v821
    %v1654 = vunpack.c.h.b16 %v821
    %v1655 = vunpack.c.l.b16 %v822
    %v1656 = vunpack.c.h.b16 %v822
    %v1657 = vunpack.c.l.b16 %v823
    %v1658 = vunpack.c.h.b16 %v823
    %v1659 = vunpack.c.l.b16 %v824
    %v1660 = vunpack.c.h.b16 %v824
    %v1661 = vunpack.c.l.b16 %v825
    %v1662 = vunpack.c.h.b16 %v825
    %v1663 = vunpack.c.l.b16 %v826
    %v1664 = vunpack.c.h.b16 %v826
    %v1665 = vunpack.c.l.b16 %v827
    %v1666 = vunpack.c.h.b16 %v827
    %v1667 = vunpack.c.l.b16 %v828
    %v1668 = vunpack.c.h.b16 %v828
    %v1669 = vunpack.c.l.b16 %v829
    %v1670 = vunpack.c.h.b16 %v829
    %v1671 = vunpack.c.l.b16 %v830
    %v1672 = vunpack.c.h.b16 %v830
    %v1673 = vunpack.c.l.b16 %v831
    %v1674 = vunpack.c.h.b16 %v831
    %v1675 = vunpack.c.l.b16 %v832
    %v1676 = vunpack.c.h.b16 %v832
    %v1677 = vunpack.c.l.b16 %v833
    %v1678 = vunpack.c.h.b16 %v833
    %v1679 = vunpack.c.l.b16 %v834
    %v1680 = vunpack.c.h.b16 %v834
    %v1681 = vunpack.c.l.b16 %v835
    %v1682 = vunpack.c.h.b16 %v835
    %v1683 = vunpack.c.l.b16 %v836
    %v1684 = vunpack.c.h.b16 %v836
    %v1685 = vunpack.c.l.b16 %v837
    %v1686 = vunpack.c.h.b16 %v837
    %v1687 = vunpack.c.l.b16 %v838
    %v1688 = vunpack.c.h.b16 %v838
    %v1689 = vunpack.c.l.b16 %v839
    %v1690 = vunpack.c.h.b16 %v839
    %v1691 = vunpack.c.l.b16 %v840
    %v1692 = vunpack.c.h.b16 %v840
    %v1693 = vunpack.c.l.b16 %v841
    %v1694 = vunpack.c.h.b16 %v841
    %v1695 = vunpack.c.l.b16 %v842
    %v1696 = vunpack.c.h.b16 %v842
    %v1697 = vunpack.c.l.b16 %v843
    %v1698 = vunpack.c.h.b16 %v843
    %v1699 = vunpack.c.l.b16 %v844
    %v1700 = vunpack.c.h.b16 %v844
    %v1701 = vunpack.c.l.b16 %v845
    %v1702 = vunpack.c.h.b16 %v845
    %v1703 = vunpack.c.l.b16 %v846
    %v1704 = vunpack.c.h.b16 %v846
    %v1705 = vunpack.c.l.b16 %v847
    %v1706 = vunpack.c.h.b16 %v847
    %v1707 = vunpack.c.l.b16 %v848
    %v1708 = vunpack.c.h.b16 %v848
    %v1709 = vunpack.c.l.b16 %v849
    %v1710 = vunpack.c.h.b16 %v849
    %v1711 = vunpack.c.l.b16 %v850
    %v1712 = vunpack.c.h.b16 %v850
    %v1713 = vunpack.c.l.b16 %v851
    %v1714 = vunpack.c.h.b16 %v851
    %v1715 = vunpack.c.l.b16 %v852
    %v1716 = vunpack.c.h.b16 %v852
    %v1717 = vunpack.c.l.b16 %v853
    %v1718 = vunpack.c.h.b16 %v853
    %v1719 = vunpack.c.l.b16 %v854
    %v1720 = vunpack.c.h.b16 %v854
    %v1721 = vunpack.c.l.b16 %v855
    %v1722 = vunpack.c.h.b16 %v855
    %v1723 = vunpack.c.l.b16 %v856
    %v1724 = vunpack.c.h.b16 %v856
    %v1725 = vunpack.c.l.b16 %v857
    %v1726 = vunpack.c.h.b16 %v857
    %v1727 = vunpack.c.l.b16 %v858
    %v1728 = vunpack.c.h.b16 %v858
    %v1729 = vunpack.c.l.b16 %v859
    %v1730 = vunpack.c.h.b16 %v859
    %v1731 = vunpack.c.l.b16 %v860
    %v1732 = vunpack.c.h.b16 %v860
    %v1733 = vunpack.c.l.b16 %v861
    %v1734 = vunpack.c.h.b16 %v861
    %v1735 = vunpack.c.l.b16 %v862
    %v1736 = vunpack.c.h.b16 %v862
    %v1737 = vunpack.c.l.b16 %v863
    %v1738 = vunpack.c.h.b16 %v863
    %v1739 = vunpack.c.l.b16 %v864
    %v1740 = vunpack.c.h.b16 %v864
    %v1741 = vunpack.c.l.b16 %v865
    %v1742 = vunpack.c.h.b16 %v865
    %v1743 = vunpack.c.l.b16 %v866
    %v1744 = vunpack.c.h.b16 %v866
    %v1745 = vunpack.c.l.b16 %v867
    %v1746 = vunpack.c.h.b16 %v867
    %v1747 = vunpack.c.l.b16 %v868
    %v1748 = vunpack.c.h.b16 %v868
    %v1749 = vunpack.c.l.b16 %v869
    %v1750 = vunpack.c.h.b16 %v869
    %v1751 = vunpack.c.l.b16 %v870
    %v1752 = vunpack.c.h.b16 %v870
    %v1753 = vunpack.c.l.b16 %v871
    %v1754 = vunpack.c.h.b16 %v871
    %v1755 = vunpack.c.l.b16 %v872
    %v1756 = vunpack.c.h.b16 %v872
    %v1757 = vunpack.c.l.b16 %v873
    %v1758 = vunpack.c.h.b16 %v873
    %v1759 = vunpack.c.l.b16 %v874
    %v1760 = vunpack.c.h.b16 %v874
    %v1761 = vunpack.c.l.b16 %v875
    %v1762 = vunpack.c.h.b16 %v875
    %v1763 = vunpack.c.l.b16 %v876
    %v1764 = vunpack.c.h.b16 %v876
    %v1765 = vunpack.c.l.b16 %v877
    %v1766 = vunpack.c.h.b16 %v877
    %v1767 = vunpack.c.l.b16 %v878
    %v1768 = vunpack.c.h.b16 %v878
    %v1769 = vunpack.c.l.b16 %v879
    %v1770 = vunpack.c.h.b16 %v879
    %v1771 = vunpack.c.l.b16 %v880
    %v1772 = vunpack.c.h.b16 %v880
    %v1773 = vunpack.c.l.b16 %v881
    %v1774 = vunpack.c.h.b16 %v881
    %v1775 = vunpack.c.l.b16 %v882
    %v1776 = vunpack.c.h.b16 %v882
    %v1777 = vunpack.c.l.b16 %v883
    %v1778 = vunpack.c.h.b16 %v883
    %v1779 = vunpack.c.l.b16 %v884
    %v1780 = vunpack.c.h.b16 %v884
    %v1781 = vunpack.c.l.b16 %v885
    %v1782 = vunpack.c.h.b16 %v885
    %v1783 = vunpack.c.l.b16 %v886
    %v1784 = vunpack.c.h.b16 %v886
    %v1785 = vunpack.c.l.b16 %v887
    %v1786 = vunpack.c.h.b16 %v887
    %v1787 = vunpack.c.l.b16 %v888
    %v1788 = vunpack.c.h.b16 %v888
    %v1789 = vunpack.c.l.b16 %v889
    %v1790 = vunpack.c.h.b16 %v889
    %v1791 = vunpack.c.l.b16 %v890
    %v1792 = vunpack.c.h.b16 %v890
    %v1793 = vunpack.c.l.b16 %v891
    %v1794 = vunpack.c.h.b16 %v891
    %v1795 = vunpack.c.l.b16 %v892
    %v1796 = vunpack.c.h.b16 %v892
    %v1797 = vunpack.c.l.b16 %v893
    %v1798 = vunpack.c.h.b16 %v893
    %v1799 = vunpack.c.l.b16 %v894
    %v1800 = vunpack.c.h.b16 %v894
    %v1801 = vunpack.c.l.b16 %v895
    %v1802 = vunpack.c.h.b16 %v895
    %v1803 = vunpack.c.l.b16 %v896
    %v1804 = vunpack.c.h.b16 %v896
    %v1805 = vunpack.c.l.b16 %v897
    %v1806 = vunpack.c.h.b16 %v897
    %v1807 = vunpack.c.l.b16 %v898
    %v1808 = vunpack.c.h.b16 %v898
    %v1809 = vunpack.c.l.b16 %v899
    %v1810 = vunpack.c.h.b16 %v899
    %v1811 = vunpack.c.l.b16 %v900
    %v1812 = vunpack.c.h.b16 %v900
    %v1813 = vunpack.c.l.b16 %v901
    %v1814 = vunpack.c.h.b16 %v901
    %v1815 = vunpack.c.l.b16 %v902
    %v1816 = vunpack.c.h.b16 %v902
    %v1817 = vunpack.c.l.b16 %v903
    %v1818 = vunpack.c.h.b16 %v903
    %v1819 = vunpack.c.l.b16 %v904
    %v1820 = vunpack.c.h.b16 %v904
    %v1821 = vunpack.c.l.b16 %v905
    %v1822 = vunpack.c.h.b16 %v905
    %v1823 = vunpack.c.l.b16 %v906
    %v1824 = vunpack.c.h.b16 %v906
    %v1825 = vunpack.c.l.b16 %v907
    %v1826 = vunpack.c.h.b16 %v907
    %v1827 = vunpack.c.l.b16 %v908
    %v1828 = vunpack.c.h.b16 %v908
    %v1829 = vunpack.c.l.b16 %v909
    %v1830 = vunpack.c.h.b16 %v909
    %v1831 = vunpack.c.l.b16 %v910
    %v1832 = vunpack.c.h.b16 %v910
    %v1833 = vunpack.c.l.b16 %v911
    %v1834 = vunpack.c.h.b16 %v911
    %v1835 = vunpack.c.l.b16 %v912
    %v1836 = vunpack.c.h.b16 %v912
    %v1837 = vunpack.c.l.b16 %v913
    %v1838 = vunpack.c.h.b16 %v913
    %v1839 = vunpack.c.l.b16 %v914
    %v1840 = vunpack.c.h.b16 %v914
    %v1841 = vunpack.c.l.b16 %v915
    %v1842 = vunpack.c.h.b16 %v915
    %v1843 = vunpack.c.l.b16 %v916
    %v1844 = vunpack.c.h.b16 %v916
    %v1845 = vunpack.c.l.b16 %v917
    %v1846 = vunpack.c.h.b16 %v917
    %v1847 = vunpack.c.l.b16 %v918
    %v1848 = vunpack.c.h.b16 %v918
    %v1849 = vunpack.c.l.b16 %v919
    %v1850 = vunpack.c.h.b16 %v919
    %v1851 = vunpack.c.l.b16 %v920
    %v1852 = vunpack.c.h.b16 %v920
    %v1853 = vunpack.c.l.b16 %v921
    %v1854 = vunpack.c.h.b16 %v921
    %v1855 = vunpack.c.l.b16 %v922
    %v1856 = vunpack.c.h.b16 %v922
    %v1857 = vunpack.c.l.b16 %v923
    %v1858 = vunpack.c.h.b16 %v923
    %v1859 = vunpack.c.l.b16 %v924
    %v1860 = vunpack.c.h.b16 %v924
    %v1861 = vunpack.c.l.b16 %v925
    %v1862 = vunpack.c.h.b16 %v925
    %v1863 = vunpack.c.l.b16 %v926
    %v1864 = vunpack.c.h.b16 %v926
    %v1865 = vunpack.c.l.b16 %v927
    %v1866 = vunpack.c.h.b16 %v927
    %v1867 = vunpack.c.l.b16 %v928
    %v1868 = vunpack.c.h.b16 %v928
    %v1869 = vunpack.c.l.b16 %v929
    %v1870 = vunpack.c.h.b16 %v929
    %v1871 = vunpack.c.l.b16 %v930
    %v1872 = vunpack.c.h.b16 %v930
    %v1873 = vunpack.c.l.b16 %v931
    %v1874 = vunpack.c.h.b16 %v931
    %v1875 = vunpack.c.l.b16 %v932
    %v1876 = vunpack.c.h.b16 %v932
    %v1877 = vunpack.c.l.b16 %v933
    %v1878 = vunpack.c.h.b16 %v933
    %v1879 = vunpack.c.l.b16 %v934
    %v1880 = vunpack.c.h.b16 %v934
    %v1881 = vunpack.c.l.b16 %v935
    %v1882 = vunpack.c.h.b16 %v935
    %v1883 = vunpack.c.l.b16 %v936
    %v1884 = vunpack.c.h.b16 %v936
    %v1885 = vunpack.c.l.b16 %v937
    %v1886 = vunpack.c.h.b16 %v937
    %v1887 = vunpack.c.l.b16 %v938
    %v1888 = vunpack.c.h.b16 %v938
    %v1889 = vunpack.c.l.b16 %v939
    %v1890 = vunpack.c.h.b16 %v939
    %v1891 = vunpack.c.l.b16 %v940
    %v1892 = vunpack.c.h.b16 %v940
    %v1893 = vunpack.c.l.b16 %v941
    %v1894 = vunpack.c.h.b16 %v941
    %v1895 = vunpack.c.l.b16 %v942
    %v1896 = vunpack.c.h.b16 %v942
    %v1897 = vunpack.c.l.b16 %v943
    %v1898 = vunpack.c.h.b16 %v943
    %v1899 = vunpack.c.l.b16 %v944
    %v1900 = vunpack.c.h.b16 %v944
    %v1901 = vunpack.c.l.b16 %v945
    %v1902 = vunpack.c.h.b16 %v945
    %v1903 = vunpack.c.l.b16 %v946
    %v1904 = vunpack.c.h.b16 %v946
    %v1905 = vunpack.c.l.b16 %v947
    %v1906 = vunpack.c.h.b16 %v947
    %v1907 = vunpack.c.l.b16 %v948
    %v1908 = vunpack.c.h.b16 %v948
    %v1909 = vunpack.c.l.b16 %v949
    %v1910 = vunpack.c.h.b16 %v949
    %v1911 = vunpack.c.l.b16 %v950
    %v1912 = vunpack.c.h.b16 %v950
    %v1913 = vunpack.c.l.b16 %v951
    %v1914 = vunpack.c.h.b16 %v951
    %v1915 = vunpack.c.l.b16 %v952
    %v1916 = vunpack.c.h.b16 %v952
    %v1917 = vunpack.c.l.b16 %v953
    %v1918 = vunpack.c.h.b16 %v953
    %v1919 = vunpack.c.l.b16 %v954
    %v1920 = vunpack.c.h.b16 %v954
    %v1921 = vunpack.c.l.b16 %v955
    %v1922 = vunpack.c.h.b16 %v955
    %v1923 = vunpack.c.l.b16 %v956
    %v1924 = vunpack.c.h.b16 %v956
    %v1925 = vunpack.c.l.b16 %v957
    %v1926 = vunpack.c.h.b16 %v957
    %v1927 = vunpack.c.l.b16 %v958
    %v1928 = vunpack.c.h.b16 %v958
    %v1929 = vunpack.c.l.b16 %v959
    %v1930 = vunpack.c.h.b16 %v959
    %v1931 = vunpack.c.l.b16 %v960
    %v1932 = vunpack.c.h.b16 %v960
    %v1933 = vunpack.c.l.b16 %v961
    %v1934 = vunpack.c.h.b16 %v961
    %v1935 = vunpack.c.l.b16 %v962
    %v1936 = vunpack.c.h.b16 %v962
    %v1937 = vunpack.c.l.b16 %v963
    %v1938 = vunpack.c.h.b16 %v963
    %v1939 = vunpack.c.l.b16 %v964
    %v1940 = vunpack.c.h.b16 %v964
    %v1941 = vunpack.c.l.b16 %v965
    %v1942 = vunpack.c.h.b16 %v965
    %v1943 = vunpack.c.l.b16 %v966
    %v1944 = vunpack.c.h.b16 %v966
    %v1945 = vunpack.c.l.b16 %v967
    %v1946 = vunpack.c.h.b16 %v967
    %v1947 = vunpack.c.l.b16 %v968
    %v1948 = vunpack.c.h.b16 %v968
    %v1949 = vunpack.c.l.b16 %v969
    %v1950 = vunpack.c.h.b16 %v969
    %v1951 = vunpack.c.l.b16 %v970
    %v1952 = vunpack.c.h.b16 %v970
    %v1953 = vunpack.c.l.b16 %v971
    %v1954 = vunpack.c.h.b16 %v971
    %v1955 = vunpack.c.l.b16 %v972
    %v1956 = vunpack.c.h.b16 %v972
    %v1957 = vunpack.c.l.b16 %v973
    %v1958 = vunpack.c.h.b16 %v973
    %v1959 = vunpack.c.l.b16 %v974
    %v1960 = vunpack.c.h.b16 %v974
    %v1961 = vunpack.c.l.b16 %v975
    %v1962 = vunpack.c.h.b16 %v975
    %v1963 = vunpack.c.l.b16 %v976
    %v1964 = vunpack.c.h.b16 %v976
    %v1965 = vunpack.c.l.b16 %v977
    %v1966 = vunpack.c.h.b16 %v977
    %v1967 = vunpack.c.l.b16 %v978
    %v1968 = vunpack.c.h.b16 %v978
    %v1969 = vunpack.c.l.b16 %v979
    %v1970 = vunpack.c.h.b16 %v979
    %v1971 = vunpack.c.l.b16 %v980
    %v1972 = vunpack.c.h.b16 %v980
    %v1973 = vunpack.c.l.b16 %v981
    %v1974 = vunpack.c.h.b16 %v981
    %v1975 = vunpack.c.l.b16 %v982
    %v1976 = vunpack.c.h.b16 %v982
    %v1977 = vunpack.c.l.b16 %v983
    %v1978 = vunpack.c.h.b16 %v983
    %v1979 = vunpack.c.l.b16 %v984
    %v1980 = vunpack.c.h.b16 %v984
    %v1981 = vunpack.c.l.b16 %v985
    %v1982 = vunpack.c.h.b16 %v985
    %v1983 = vunpack.c.l.b16 %v986
    %v1984 = vunpack.c.h.b16 %v986
    %v1985 = vunpack.c.l.b16 %v987
    %v1986 = vunpack.c.h.b16 %v987
    %v1987 = vunpack.c.l.b16 %v988
    %v1988 = vunpack.c.h.b16 %v988
    %v1989 = vunpack.c.l.b16 %v989
    %v1990 = vunpack.c.h.b16 %v989
    %v1991 = vunpack.c.l.b16 %v990
    %v1992 = vunpack.c.h.b16 %v990
    %v1993 = vunpack.c.l.b16 %v991
    %v1994 = vunpack.c.h.b16 %v991
    %v1995 = vunpack.c.l.b16 %v992
    %v1996 = vunpack.c.h.b16 %v992
    %v1997 = vunpack.c.l.b16 %v993
    %v1998 = vunpack.c.h.b16 %v993
    %v1999 = vunpack.c.l.b16 %v994
    %v2000 = vunpack.c.h.b16 %v994
    %v2001 = vunpack.c.l.b16 %v995
    %v2002 = vunpack.c.h.b16 %v995
    %v2003 = vunpack.c.l.b16 %v996
    %v2004 = vunpack.c.h.b16 %v996
    %v2005 = vunpack.c.l.b16 %v997
    %v2006 = vunpack.c.h.b16 %v997
    %v2007 = vunpack.c.l.b16 %v998
    %v2008 = vunpack.c.h.b16 %v998
    %v2009 = vunpack.c.l.b16 %v999
    %v2010 = vunpack.c.h.b16 %v999
    %v2011 = vunpack.c.l.b16 %v1000
    %v2012 = vunpack.c.h.b16 %v1000
    %v2013 = vunpack.c.l.b16 %v1001
    %v2014 = vunpack.c.h.b16 %v1001
    %v2015 = vunpack.c.l.b16 %v1002
    %v2016 = vunpack.c.h.b16 %v1002
    %v2017 = vunpack.c.l.b16 %v1003
    %v2018 = vunpack.c.h.b16 %v1003
    %v2019 = vunpack.c.l.b16 %v1004
    %v2020 = vunpack.c.h.b16 %v1004
    %v2021 = vunpack.c.l.b16 %v1005
    %v2022 = vunpack.c.h.b16 %v1005
    %v2023 = vunpack.c.l.b16 %v1006
    %v2024 = vunpack.c.h.b16 %v1006
    %v2025 = vunpack.c.l.b16 %v1007
    %v2026 = vunpack.c.h.b16 %v1007
    %v2027 = vunpack.c.l.b16 %v1008
    %v2028 = vunpack.c.h.b16 %v1008
    %v2029 = vunpack.c.l.b16 %v1009
    %v2030 = vunpack.c.h.b16 %v1009
    %v2031 = vunpack.c.l.b16 %v1010
    %v2032 = vunpack.c.h.b16 %v1010
    %v2033 = vunpack.c.l.b16 %v1011
    %v2034 = vunpack.c.h.b16 %v1011
    %v2035 = vunpack.c.l.b16 %v1012
    %v2036 = vunpack.c.h.b16 %v1012
    %v2037 = vunpack.c.l.b16 %v1013
    %v2038 = vunpack.c.h.b16 %v1013
    %v2039 = vunpack.c.l.b16 %v1014
    %v2040 = vunpack.c.h.b16 %v1014
    %v2041 = vunpack.c.l.b16 %v1015
    %v2042 = vunpack.c.h.b16 %v1015
    %v2043 = vunpack.c.l.b16 %v1016
    %v2044 = vunpack.c.h.b16 %v1016
    %v2045 = vunpack.c.l.b16 %v1017
    %v2046 = vunpack.c.h.b16 %v1017
    %v2047 = vunpack.c.l.b16 %v1018
    %v2048 = vunpack.c.h.b16 %v1018
    %v2049 = vunpack.c.l.b16 %v1019
    %v2050 = vunpack.c.h.b16 %v1019
    %v2051 = vunpack.c.l.b16 %v1020
    %v2052 = vunpack.c.h.b16 %v1020
    %v2053 = vunpack.c.l.b16 %v1021
    %v2054 = vunpack.c.h.b16 %v1021
    %v2055 = vunpack.c.l.b16 %v1022
    %v2056 = vunpack.c.h.b16 %v1022
    %v2057 = vunpack.c.l.b16 %v1023
    %v2058 = vunpack.c.h.b16 %v1023
    %v2059 = vunpack.c.l.b16 %v1024
    %v2060 = vunpack.c.h.b16 %v1024
    %v2061 = vunpack.c.l.b16 %v1025
    %v2062 = vunpack.c.h.b16 %v1025
    %v2063 = vunpack.c.l.b16 %v1026
    %v2064 = vunpack.c.h.b16 %v1026
    %v2065 = vunpack.c.l.b16 %v1027
    %v2066 = vunpack.c.h.b16 %v1027
    %v2067 = vunpack.c.l.b16 %v1028
    %v2068 = vunpack.c.h.b16 %v1028
    %v2069 = vunpack.c.l.b16 %v1029
    %v2070 = vunpack.c.h.b16 %v1029
    %v2071 = vunpack.c.l.b16 %v1030
    %v2072 = vunpack.c.h.b16 %v1030
    %v2073 = vunpack.c.l.b16 %v1031
    %v2074 = vunpack.c.h.b16 %v1031
    %v2075 = vunpack.c.l.b16 %v1032
    %v2076 = vunpack.c.h.b16 %v1032
    %v2077 = vunpack.c.l.b16 %v1033
    %v2078 = vunpack.c.h.b16 %v1033
    %v2079 = vunpack.c.l.b16 %v1034
    %v2080 = vunpack.c.h.b16 %v1034
    %v2081 = vunpack.c.l.b16 %v1035
    %v2082 = vunpack.c.h.b16 %v1035
    %v2083 = vunpack.c.l.b16 %v1036
    %v2084 = vunpack.c.h.b16 %v1036
    %v2085 = vunpack.c.l.b16 %v1037
    %v2086 = vunpack.c.h.b16 %v1037
    %v2087 = vunpack.c.l.b16 %v1038
    %v2088 = vunpack.c.h.b16 %v1038
    %v2089 = vunpack.c.l.b16 %v1039
    %v2090 = vunpack.c.h.b16 %v1039
    %v2091 = vunpack.c.l.b16 %v1040
    %v2092 = vunpack.c.h.b16 %v1040
    %v2093 = vunpack.c.l.b16 %v1041
    %v2094 = vunpack.c.h.b16 %v1041
    %v2095 = vpack.c.b16 %v1525, %v1519
    %v2096 = vpack.c.b16 %v1526, %v1520
    %v2097 = vpack.c.b16 %v1527, %v1521
    %v2098 = vpack.c.b16 %v1528, %v1522
    %v2099 = vpack.c.b16 %v1529, %v1523
    %v2100 = vpack.c.b16 %v1530, %v1524
    %v2101 = vpack.c.b16 %v1537, %v1531
    %v2102 = vpack.c.b16 %v1538, %v1532
    %v2103 = vpack.c.b16 %v1539, %v1533
    %v2104 = vpack.c.b16 %v1540, %v1534
    %v2105 = vpack.c.b16 %v1541, %v1535
    %v2106 = vpack.c.b16 %v1542, %v1536
    %v2107 = vpack.c.b16 %v1549, %v1543
    %v2108 = vpack.c.b16 %v1550, %v1544
    %v2109 = vpack.c.b16 %v1551, %v1545
    %v2110 = vpack.c.b16 %v1552, %v1546
    %v2111 = vpack.c.b16 %v1553, %v1547
    %v2112 = vpack.c.b16 %v1554, %v1548
    %v2113 = vpack.c.b16 %v1561, %v1555
    %v2114 = vpack.c.b16 %v1562, %v1556
    %v2115 = vpack.c.b16 %v1563, %v1557
    %v2116 = vpack.c.b16 %v1564, %v1558
    %v2117 = vpack.c.b16 %v1565, %v1559
    %v2118 = vpack.c.b16 %v1566, %v1560
    %v2119 = vpack.c.b16 %v1573, %v1567
    %v2120 = vpack.c.b16 %v1574, %v1568
    %v2121 = vpack.c.b16 %v1575, %v1569
    %v2122 = vpack.c.b16 %v1576, %v1570
    %v2123 = vpack.c.b16 %v1577, %v1571
    %v2124 = vpack.c.b16 %v1578, %v1572
    %v2125 = vpack.c.b16 %v1585, %v1579
    %v2126 = vpack.c.b16 %v1586, %v1580
    %v2127 = vpack.c.b16 %v1587, %v1581
    %v2128 = vpack.c.b16 %v1588, %v1582
    %v2129 = vpack.c.b16 %v1589, %v1583
    %v2130 = vpack.c.b16 %v1590, %v1584
    %v2131 = vpack.c.b16 %v1597, %v1591
    %v2132 = vpack.c.b16 %v1598, %v1592
    %v2133 = vpack.c.b16 %v1599, %v1593
    %v2134 = vpack.c.b16 %v1600, %v1594
    %v2135 = vpack.c.b16 %v1601, %v1595
    %v2136 = vpack.c.b16 %v1602, %v1596
    %v2137 = vpack.c.b16 %v1609, %v1603
    %v2138 = vpack.c.b16 %v1610, %v1604
    %v2139 = vpack.c.b16 %v1611, %v1605
    %v2140 = vpack.c.b16 %v1612, %v1606
    %v2141 = vpack.c.b16 %v1613, %v1607
    %v2142 = vpack.c.b16 %v1614, %v1608
    %v2143 = vpack.c.b16 %v1621, %v1615
    %v2144 = vpack.c.b16 %v1622, %v1616
    %v2145 = vpack.c.b16 %v1623, %v1617
    %v2146 = vpack.c.b16 %v1624, %v1618
    %v2147 = vpack.c.b16 %v1625, %v1619
    %v2148 = vpack.c.b16 %v1626, %v1620
    %v2149 = vpack.c.b16 %v1633, %v1627
    %v2150 = vpack.c.b16 %v1634, %v1628
    %v2151 = vpack.c.b16 %v1635, %v1629
    %v2152 = vpack.c.b16 %v1636, %v1630
    %v2153 = vpack.c.b16 %v1637, %v1631
    %v2154 = vpack.c.b16 %v1638, %v1632
    %v2155 = vpack.c.b16 %v1645, %v1639
    %v2156 = vpack.c.b16 %v1646, %v1640
    %v2157 = vpack.c.b16 %v1647, %v1641
    %v2158 = vpack.c.b16 %v1648, %v1642
    %v2159 = vpack.c.b16 %v1649, %v1643
    %v2160 = vpack.c.b16 %v1650, %v1644
    %v2161 = vpack.c.b16 %v1657, %v1651
    %v2162 = vpack.c.b16 %v1658, %v1652
    %v2163 = vpack.c.b16 %v1659, %v1653
    %v2164 = vpack.c.b16 %v1660, %v1654
    %v2165 = vpack.c.b16 %v1661, %v1655
    %v2166 = vpack.c.b16 %v1662, %v1656
    %v2167 = vpack.c.b16 %v1669, %v1663
    %v2168 = vpack.c.b16 %v1670, %v1664
    %v2169 = vpack.c.b16 %v1671, %v1665
    %v2170 = vpack.c.b16 %v1672, %v1666
    %v2171 = vpack.c.b16 %v1673, %v1667
    %v2172 = vpack.c.b16 %v1674, %v1668
    %v2173 = vpack.c.b16 %v1681, %v1675
    %v2174 = vpack.c.b16 %v1682, %v1676
    %v2175 = vpack.c.b16 %v1683, %v1677
    %v2176 = vpack.c.b16 %v1684, %v1678
    %v2177 = vpack.c.b16 %v1685, %v1679
    %v2178 = vpack.c.b16 %v1686, %v1680
    %v2179 = vpack.c.b16 %v1693, %v1687
    %v2180 = vpack.c.b16 %v1694, %v1688
    %v2181 = vpack.c.b16 %v1695, %v1689
    %v2182 = vpack.c.b16 %v1696, %v1690
    %v2183 = vpack.c.b16 %v1697, %v1691
    %v2184 = vpack.c.b16 %v1698, %v1692
    %v2185 = vpack.c.b16 %v1705, %v1699
    %v2186 = vpack.c.b16 %v1706, %v1700
    %v2187 = vpack.c.b16 %v1707, %v1701
    %v2188 = vpack.c.b16 %v1708, %v1702
    %v2189 = vpack.c.b16 %v1709, %v1703
    %v2190 = vpack.c.b16 %v1710, %v1704
    %v2191 = vpack.c.b16 %v1717, %v1711
    %v2192 = vpack.c.b16 %v1718, %v1712
    %v2193 = vpack.c.b16 %v1719, %v1713
    %v2194 = vpack.c.b16 %v1720, %v1714
    %v2195 = vpack.c.b16 %v1721, %v1715
    %v2196 = vpack.c.b16 %v1722, %v1716
    %v2197 = vpack.c.b16 %v1729, %v1723
    %v2198 = vpack.c.b16 %v1730, %v1724
    %v2199 = vpack.c.b16 %v1731, %v1725
    %v2200 = vpack.c.b16 %v1732, %v1726
    %v2201 = vpack.c.b16 %v1733, %v1727
    %v2202 = vpack.c.b16 %v1734, %v1728
    %v2203 = vpack.c.b16 %v1741, %v1735
    %v2204 = vpack.c.b16 %v1742, %v1736
    %v2205 = vpack.c.b16 %v1743, %v1737
    %v2206 = vpack.c.b16 %v1744, %v1738
    %v2207 = vpack.c.b16 %v1745, %v1739
    %v2208 = vpack.c.b16 %v1746, %v1740
    %v2209 = vpack.c.b16 %v1753, %v1747
    %v2210 = vpack.c.b16 %v1754, %v1748
    %v2211 = vpack.c.b16 %v1755, %v1749
    %v2212 = vpack.c.b16 %v1756, %v1750
    %v2213 = vpack.c.b16 %v1757, %v1751
    %v2214 = vpack.c.b16 %v1758, %v1752
    %v2215 = vpack.c.b16 %v1765, %v1759
    %v2216 = vpack.c.b16 %v1766, %v1760
    %v2217 = vpack.c.b16 %v1767, %v1761
    %v2218 = vpack.c.b16 %v1768, %v1762
    %v2219 = vpack.c.b16 %v1769, %v1763
    %v2220 = vpack.c.b16 %v1770, %v1764
    %v2221 = vpack.c.b16 %v1777, %v1771
    %v2222 = vpack.c.b16 %v1778, %v1772
    %v2223 = vpack.c.b16 %v1779, %v1773
    %v2224 = vpack.c.b16 %v1780, %v1774
    %v2225 = vpack.c.b16 %v1781, %v1775
    %v2226 = vpack.c.b16 %v1782, %v1776
    %v2227 = vpack.c.b16 %v1789, %v1783
    %v2228 = vpack.c.b16 %v1790, %v1784
    %v2229 = vpack.c.b16 %v1791, %v1785
    %v2230 = vpack.c.b16 %v1792, %v1786
    %v2231 = vpack.c.b16 %v1793, %v1787
    %v2232 = vpack.c.b16 %v1794, %v1788
    %v2233 = vpack.c.b16 %v1801, %v1795
    %v2234 = vpack.c.b16 %v1802, %v1796
    %v2235 = vpack.c.b16 %v1803, %v1797
    %v2236 = vpack.c.b16 %v1804, %v1798
    %v2237 = vpack.c.b16 %v1805, %v1799
    %v2238 = vpack.c.b16 %v1806, %v1800
    %v2239 = vpack.c.b16 %v1813, %v1807
    %v2240 = vpack.c.b16 %v1814, %v1808
    %v2241 = vpack.c.b16 %v1815, %v1809
    %v2242 = vpack.c.b16 %v1816, %v1810
    %v2243 = vpack.c.b16 %v1817, %v1811
    %v2244 = vpack.c.b16 %v1818, %v1812
    %v2245 = vpack.c.b16 %v1825, %v1819
    %v2246 = vpack.c.b16 %v1826, %v1820
    %v2247 = vpack.c.b16 %v1827, %v1821
    %v2248 = vpack.c.b16 %v1828, %v1822
    %v2249 = vpack.c.b16 %v1829, %v1823
    %v2250 = vpack.c.b16 %v1830, %v1824
    %v2251 = vpack.c.b16 %v1837, %v1831
    %v2252 = vpack.c.b16 %v1838, %v1832
    %v2253 = vpack.c.b16 %v1839, %v1833
    %v2254 = vpack.c.b16 %v1840, %v1834
    %v2255 = vpack.c.b16 %v1841, %v1835
    %v2256 = vpack.c.b16 %v1842, %v1836
    %v2257 = vpack.c.b16 %v1849, %v1843
    %v2258 = vpack.c.b16 %v1850, %v1844
    %v2259 = vpack.c.b16 %v1851, %v1845
    %v2260 = vpack.c.b16 %v1852, %v1846
    %v2261 = vpack.c.b16 %v1853, %v1847
    %v2262 = vpack.c.b16 %v1854, %v1848
    %v2263 = vpack.c.b16 %v1861, %v1855
    %v2264 = vpack.c.b16 %v1862, %v1856
    %v2265 = vpack.c.b16 %v1863, %v1857
    %v2266 = vpack.c.b16 %v1864, %v1858
    %v2267 = vpack.c.b16 %v1865, %v1859
    %v2268 = vpack.c.b16 %v1866, %v1860
    %v2269 = vpack.c.b16 %v1873, %v1867
    %v2270 = vpack.c.b16 %v1874, %v1868
    %v2271 = vpack.c.b16 %v1875, %v1869
    %v2272 = vpack.c.b16 %v1876, %v1870
    %v2273 = vpack.c.b16 %v1877, %v1871
    %v2274 = vpack.c.b16 %v1878, %v1872
    %v2275 = vpack.c.b16 %v1885, %v1879
    %v2276 = vpack.c.b16 %v1886, %v1880
    %v2277 = vpack.c.b16 %v1887, %v1881
    %v2278 = vpack.c.b16 %v1888, %v1882
    %v2279 = vpack.c.b16 %v1889, %v1883
    %v2280 = vpack.c.b16 %v1890, %v1884
    %v2281 = vpack.c.b16 %v1897, %v1891
    %v2282 = vpack.c.b16 %v1898, %v1892
    %v2283 = vpack.c.b16 %v1899, %v1893
    %v2284 = vpack.c.b16 %v1900, %v1894
    %v2285 = vpack.c.b16 %v1901, %v1895
    %v2286 = vpack.c.b16 %v1902, %v1896
    %v2287 = vpack.c.b16 %v1909, %v1903
    %v2288 = vpack.c.b16 %v1910, %v1904
    %v2289 = vpack.c.b16 %v1911, %v1905
    %v2290 = vpack.c.b16 %v1912, %v1906
    %v2291 = vpack.c.b16 %v1913, %v1907
    %v2292 = vpack.c.b16 %v1914, %v1908
    %v2293 = vpack.c.b16 %v1921, %v1915
    %v2294 = vpack.c.b16 %v1922, %v1916
    %v2295 = vpack.c.b16 %v1923, %v1917
    %v2296 = vpack.c.b16 %v1924, %v1918
    %v2297 = vpack.c.b16 %v1925, %v1919
    %v2298 = vpack.c.b16 %v1926, %v1920
    %v2299 = vpack.c.b16 %v1933, %v1927
    %v2300 = vpack.c.b16 %v1934, %v1928
    %v2301 = vpack.c.b16 %v1935, %v1929
    %v2302 = vpack.c.b16 %v1936, %v1930
    %v2303 = vpack.c.b16 %v1937, %v1931
    %v2304 = vpack.c.b16 %v1938, %v1932
    %v2305 = vpack.c.b16 %v1945, %v1939
    %v2306 = vpack.c.b16 %v1946, %v1940
    %v2307 = vpack.c.b16 %v1947, %v1941
    %v2308 = vpack.c.b16 %v1948, %v1942
    %v2309 = vpack.c.b16 %v1949, %v1943
    %v2310 = vpack.c.b16 %v1950, %v1944
    %v2311 = vpack.c.b16 %v1957, %v1951
    %v2312 = vpack.c.b16 %v1958, %v1952
    %v2313 = vpack.c.b16 %v1959, %v1953
    %v2314 = vpack.c.b16 %v1960, %v1954
    %v2315 = vpack.c.b16 %v1961, %v1955
    %v2316 = vpack.c.b16 %v1962, %v1956
    %v2317 = vpack.c.b16 %v1969, %v1963
    %v2318 = vpack.c.b16 %v1970, %v1964
    %v2319 = vpack.c.b16 %v1971, %v1965
    %v2320 = vpack.c.b16 %v1972, %v1966
    %v2321 = vpack.c.b16 %v1973, %v1967
    %v2322 = vpack.c.b16 %v1974, %v1968
    %v2323 = vpack.c.b16 %v1981, %v1975
    %v2324 = vpack.c.b16 %v1982, %v1976
    %v2325 = vpack.c.b16 %v1983, %v1977
    %v2326 = vpack.c.b16 %v1984, %v1978
    %v2327 = vpack.c.b16 %v1985, %v1979
    %v2328 = vpack.c.b16 %v1986, %v1980
    %v2329 = vpack.c.b16 %v1993, %v1987
    %v2330 = vpack.c.b16 %v1994, %v1988
    %v2331 = vpack.c.b16 %v1995, %v1989
    %v2332 = vpack.c.b16 %v1996, %v1990
    %v2333 = vpack.c.b16 %v1997, %v1991
    %v2334 = vpack.c.b16 %v1998, %v1992
    %v2335 = vpack.c.b16 %v2005, %v1999
    %v2336 = vpack.c.b16 %v2006, %v2000
    %v2337 = vpack.c.b16 %v2007, %v2001
    %v2338 = vpack.c.b16 %v2008, %v2002
    %v2339 = vpack.c.b16 %v2009, %v2003
    %v2340 = vpack.c.b16 %v2010, %v2004
    %v2341 = vpack.c.b16 %v2017, %v2011
    %v2342 = vpack.c.b16 %v2018, %v2012
    %v2343 = vpack.c.b16 %v2019, %v2013
    %v2344 = vpack.c.b16 %v2020, %v2014
    %v2345 = vpack.c.b16 %v2021, %v2015
    %v2346 = vpack.c.b16 %v2022, %v2016
    %v2347 = vpack.c.b16 %v2029, %v2023
    %v2348 = vpack.c.b16 %v2030, %v2024
    %v2349 = vpack.c.b16 %v2031, %v2025
    %v2350 = vpack.c.b16 %v2032, %v2026
    %v2351 = vpack.c.b16 %v2033, %v2027
    %v2352 = vpack.c.b16 %v2034, %v2028
    %v2353 = vpack.c.b16 %v2041, %v2035
    %v2354 = vpack.c.b16 %v2042, %v2036
    %v2355 = vpack.c.b16 %v2043, %v2037
    %v2356 = vpack.c.b16 %v2044, %v2038
    %v2357 = vpack.c.b16 %v2045, %v2039
    %v2358 = vpack.c.b16 %v2046, %v2040
    %v2359 = vpack.c.b16 %v2053, %v2047
    %v2360 = vpack.c.b16 %v2054, %v2048
    %v2361 = vpack.c.b16 %v2055, %v2049
    %v2362 = vpack.c.b16 %v2056, %v2050
    %v2363 = vpack.c.b16 %v2057, %v2051
    %v2364 = vpack.c.b16 %v2058, %v2052
    %v2365 = vpack.c.b16 %v2065, %v2059
    %v2366 = vpack.c.b16 %v2066, %v2060
    %v2367 = vpack.c.b16 %v2067, %v2061
    %v2368 = vpack.c.b16 %v2068, %v2062
    %v2369 = vpack.c.b16 %v2069, %v2063
    %v2370 = vpack.c.b16 %v2070, %v2064
    %v2371 = vpack.c.b16 %v2077, %v2071
    %v2372 = vpack.c.b16 %v2078, %v2072
    %v2373 = vpack.c.b16 %v2079, %v2073
    %v2374 = vpack.c.b16 %v2080, %v2074
    %v2375 = vpack.c.b16 %v2081, %v2075
    %v2376 = vpack.c.b16 %v2082, %v2076
    %v2377 = vpack.c.b16 %v2089, %v2083
    %v2378 = vpack.c.b16 %v2090, %v2084
    %v2379 = vpack.c.b16 %v2091, %v2085
    %v2380 = vpack.c.b16 %v2092, %v2086
    %v2381 = vpack.c.b16 %v2093, %v2087
    %v2382 = vpack.c.b16 %v2094, %v2088
    %2671 = vmatprep.subr.bf16.mxu0 %v2096
    %2672 = vmatpush1.bf16.msra.mxu0 %v2095
    %2673 = vmatprep.subr.bf16.mxu0 %v2102
    %2674 = vmatpush1.bf16.msra.mxu0 %v2101
    %2675 = vmatprep.subr.bf16.mxu0 %v2108
    %2676 = vmatpush1.bf16.msra.mxu0 %v2107
    %2677 = vmatprep.subr.bf16.mxu0 %v2114
    %2678 = vmatpush1.bf16.msra.mxu0 %v2113
    %2679 = vmatprep.subr.bf16.mxu0 %v2120
    %2680 = vmatpush1.bf16.msra.mxu0 %v2119
    %2681 = vmatprep.subr.bf16.mxu0 %v2126
    %2682 = vmatpush1.bf16.msra.mxu0 %v2125
    %2683 = vmatprep.subr.bf16.mxu0 %v2132
    %2684 = vmatpush1.bf16.msra.mxu0 %v2131
    %2685 = vmatprep.subr.bf16.mxu0 %v2138
    %2686 = vmatpush1.bf16.msra.mxu0 %v2137
    %2687 = vmatprep.subr.bf16.mxu0 %v2144
    %2688 = vmatpush1.bf16.msra.mxu0 %v2143
    %2689 = vmatprep.subr.bf16.mxu0 %v2150
    %2690 = vmatpush1.bf16.msra.mxu0 %v2149
    %2691 = vmatprep.subr.bf16.mxu0 %v2156
    %2692 = vmatpush1.bf16.msra.mxu0 %v2155
    %2693 = vmatprep.subr.bf16.mxu0 %v2162
    %2694 = vmatpush1.bf16.msra.mxu0 %v2161
    %2695 = vmatprep.subr.bf16.mxu0 %v2168
    %2696 = vmatpush1.bf16.msra.mxu0 %v2167
    %2697 = vmatprep.subr.bf16.mxu0 %v2174
    %2698 = vmatpush1.bf16.msra.mxu0 %v2173
    %2699 = vmatprep.subr.bf16.mxu0 %v2180
    %2700 = vmatpush1.bf16.msra.mxu0 %v2179
    %2701 = vmatprep.subr.bf16.mxu0 %v2186
    %2702 = vmatpush1.bf16.msra.mxu0 %v2185
    %2703 = vmatprep.mubr.bf16.mxu0 %v1220
    %2704 = vmatmul.mubr.bf16.gmra.mrb[0].mxu0 %v1219
    %v2705 = vpop.f32.mrb[0].mxu0
    %v2706 = vadd.f32 %v1047, %v2705
    %v2707 = vpop.f32.mrb[0].mxu0
    %v2708 = vadd.f32 %v1051, %v2707
    %v2709 = vpop.f32.mrb[0].mxu0
    %v2710 = vpop.f32.mrb[0].mxu0
    %2711 = vdwg.mxu0
    %2712 = vmatprep.subr.bf16.mxu0 %v2192
    %2713 = vmatpush1.bf16.msra.mxu0 %v2191
    %2714 = vmatprep.subr.bf16.mxu0 %v2198
    %2715 = vmatpush1.bf16.msra.mxu0 %v2197
    %2716 = vmatprep.subr.bf16.mxu0 %v2204
    %2717 = vmatpush1.bf16.msra.mxu0 %v2203
    %2718 = vmatprep.subr.bf16.mxu0 %v2210
    %2719 = vmatpush1.bf16.msra.mxu0 %v2209
    %2720 = vmatprep.subr.bf16.mxu0 %v2216
    %2721 = vmatpush1.bf16.msra.mxu0 %v2215
    %2722 = vmatprep.subr.bf16.mxu0 %v2222
    %2723 = vmatpush1.bf16.msra.mxu0 %v2221
    %2724 = vmatprep.subr.bf16.mxu0 %v2228
    %2725 = vmatpush1.bf16.msra.mxu0 %v2227
    %2726 = vmatprep.subr.bf16.mxu0 %v2234
    %2727 = vmatpush1.bf16.msra.mxu0 %v2233
    %2728 = vmatprep.subr.bf16.mxu0 %v2240
    %2729 = vmatpush1.bf16.msra.mxu0 %v2239
    %2730 = vmatprep.subr.bf16.mxu0 %v2246
    %2731 = vmatpush1.bf16.msra.mxu0 %v2245
    %2732 = vmatprep.subr.bf16.mxu0 %v2252
    %2733 = vmatpush1.bf16.msra.mxu0 %v2251
    %2734 = vmatprep.subr.bf16.mxu0 %v2258
    %2735 = vmatpush1.bf16.msra.mxu0 %v2257
    %2736 = vmatprep.subr.bf16.mxu0 %v2264
    %2737 = vmatpush1.bf16.msra.mxu0 %v2263
    %2738 = vmatprep.subr.bf16.mxu0 %v2270
    %2739 = vmatpush1.bf16.msra.mxu0 %v2269
    %2740 = vmatprep.subr.bf16.mxu0 %v2276
    %2741 = vmatpush1.bf16.msra.mxu0 %v2275
    %2742 = vmatprep.subr.bf16.mxu0 %v2282
    %2743 = vmatpush1.bf16.msra.mxu0 %v2281
    %2744 = vmatprep.mubr.bf16.mxu0 %v1222
    %2745 = vmatmul.mubr.bf16.gmra.mrb[0].mxu0 %v1221
    %v2746 = vpop.f32.mrb[0].mxu0
    %v2747 = vadd.f32 %v2706, %v2746
    %v2748 = vpop.f32.mrb[0].mxu0
    %v2749 = vadd.f32 %v2708, %v2748
    %v2750 = vpop.f32.mrb[0].mxu0
    %v2751 = vpop.f32.mrb[0].mxu0
    %2752 = vdwg.mxu0
    %2753 = vmatprep.subr.bf16.mxu0 %v2288
    %2754 = vmatpush1.bf16.msra.mxu0 %v2287
    %2755 = vmatprep.subr.bf16.mxu0 %v2294
    %2756 = vmatpush1.bf16.msra.mxu0 %v2293
    %2757 = vmatprep.subr.bf16.mxu0 %v2300
    %2758 = vmatpush1.bf16.msra.mxu0 %v2299
    %2759 = vmatprep.subr.bf16.mxu0 %v2306
    %2760 = vmatpush1.bf16.msra.mxu0 %v2305
    %2761 = vmatprep.subr.bf16.mxu0 %v2312
    %2762 = vmatpush1.bf16.msra.mxu0 %v2311
    %2763 = vmatprep.subr.bf16.mxu0 %v2318
    %2764 = vmatpush1.bf16.msra.mxu0 %v2317
    %2765 = vmatprep.subr.bf16.mxu0 %v2324
    %2766 = vmatpush1.bf16.msra.mxu0 %v2323
    %2767 = vmatprep.subr.bf16.mxu0 %v2330
    %2768 = vmatpush1.bf16.msra.mxu0 %v2329
    %2769 = vmatprep.subr.bf16.mxu0 %v2336
    %2770 = vmatpush1.bf16.msra.mxu0 %v2335
    %2771 = vmatprep.subr.bf16.mxu0 %v2342
    %2772 = vmatpush1.bf16.msra.mxu0 %v2341
    %2773 = vmatprep.subr.bf16.mxu0 %v2348
    %2774 = vmatpush1.bf16.msra.mxu0 %v2347
    %2775 = vmatprep.subr.bf16.mxu0 %v2354
    %2776 = vmatpush1.bf16.msra.mxu0 %v2353
    %2777 = vmatprep.subr.bf16.mxu0 %v2360
    %2778 = vmatpush1.bf16.msra.mxu0 %v2359
    %2779 = vmatprep.subr.bf16.mxu0 %v2366
    %2780 = vmatpush1.bf16.msra.mxu0 %v2365
    %2781 = vmatprep.subr.bf16.mxu0 %v2372
    %2782 = vmatpush1.bf16.msra.mxu0 %v2371
    %2783 = vmatprep.subr.bf16.mxu0 %v2378
    %2784 = vmatpush1.bf16.msra.mxu0 %v2377
    %2785 = vmatprep.mubr.bf16.mxu0 %v1224
    %2786 = vmatmul.mubr.bf16.gmra.mrb[0].mxu0 %v1223
    %v2787 = vpop.f32.mrb[0].mxu0
    %v2788 = vadd.f32 %v2747, %v2787
    %v2789 = vpop.f32.mrb[0].mxu0
    %v2790 = vadd.f32 %v2749, %v2789
    %v2791 = vpop.f32.mrb[0].mxu0
    %v2792 = vpop.f32.mrb[0].mxu0
    %2793 = vdwg.mxu0
    %2794 = vmatprep.subr.bf16.mxu0 %v2098
    %2795 = vmatpush1.bf16.msra.mxu0 %v2097
    %2796 = vmatprep.subr.bf16.mxu0 %v2104
    %2797 = vmatpush1.bf16.msra.mxu0 %v2103
    %2798 = vmatprep.subr.bf16.mxu0 %v2110
    %2799 = vmatpush1.bf16.msra.mxu0 %v2109
    %2800 = vmatprep.subr.bf16.mxu0 %v2116
    %2801 = vmatpush1.bf16.msra.mxu0 %v2115
    %2802 = vmatprep.subr.bf16.mxu0 %v2122
    %2803 = vmatpush1.bf16.msra.mxu0 %v2121
    %2804 = vmatprep.subr.bf16.mxu0 %v2128
    %2805 = vmatpush1.bf16.msra.mxu0 %v2127
    %2806 = vmatprep.subr.bf16.mxu0 %v2134
    %2807 = vmatpush1.bf16.msra.mxu0 %v2133
    %2808 = vmatprep.subr.bf16.mxu0 %v2140
    %2809 = vmatpush1.bf16.msra.mxu0 %v2139
    %2810 = vmatprep.subr.bf16.mxu0 %v2146
    %2811 = vmatpush1.bf16.msra.mxu0 %v2145
    %2812 = vmatprep.subr.bf16.mxu0 %v2152
    %2813 = vmatpush1.bf16.msra.mxu0 %v2151
    %2814 = vmatprep.subr.bf16.mxu0 %v2158
    %2815 = vmatpush1.bf16.msra.mxu0 %v2157
    %2816 = vmatprep.subr.bf16.mxu0 %v2164
    %2817 = vmatpush1.bf16.msra.mxu0 %v2163
    %2818 = vmatprep.subr.bf16.mxu0 %v2170
    %2819 = vmatpush1.bf16.msra.mxu0 %v2169
    %2820 = vmatprep.subr.bf16.mxu0 %v2176
    %2821 = vmatpush1.bf16.msra.mxu0 %v2175
    %2822 = vmatprep.subr.bf16.mxu0 %v2182
    %2823 = vmatpush1.bf16.msra.mxu0 %v2181
    %2824 = vmatprep.subr.bf16.mxu0 %v2188
    %2825 = vmatpush1.bf16.msra.mxu0 %v2187
    %2826 = vmatprep.mubr.bf16.mxu0 %v1220
    %2827 = vmatmul.mubr.bf16.gmra.mrb[0].mxu0 %v1219
    %v2828 = vpop.f32.mrb[0].mxu0
    %v2829 = vadd.f32 %v1055, %v2828
    %v2830 = vpop.f32.mrb[0].mxu0
    %v2831 = vadd.f32 %v1059, %v2830
    %v2832 = vpop.f32.mrb[0].mxu0
    %v2833 = vpop.f32.mrb[0].mxu0
    %2834 = vdwg.mxu0
    %2835 = vmatprep.subr.bf16.mxu0 %v2194
    %2836 = vmatpush1.bf16.msra.mxu0 %v2193
    %2837 = vmatprep.subr.bf16.mxu0 %v2200
    %2838 = vmatpush1.bf16.msra.mxu0 %v2199
    %2839 = vmatprep.subr.bf16.mxu0 %v2206
    %2840 = vmatpush1.bf16.msra.mxu0 %v2205
    %2841 = vmatprep.subr.bf16.mxu0 %v2212
    %2842 = vmatpush1.bf16.msra.mxu0 %v2211
    %2843 = vmatprep.subr.bf16.mxu0 %v2218
    %2844 = vmatpush1.bf16.msra.mxu0 %v2217
    %2845 = vmatprep.subr.bf16.mxu0 %v2224
    %2846 = vmatpush1.bf16.msra.mxu0 %v2223
    %2847 = vmatprep.subr.bf16.mxu0 %v2230
    %2848 = vmatpush1.bf16.msra.mxu0 %v2229
    %2849 = vmatprep.subr.bf16.mxu0 %v2236
    %2850 = vmatpush1.bf16.msra.mxu0 %v2235
    %2851 = vmatprep.subr.bf16.mxu0 %v2242
    %2852 = vmatpush1.bf16.msra.mxu0 %v2241
    %2853 = vmatprep.subr.bf16.mxu0 %v2248
    %2854 = vmatpush1.bf16.msra.mxu0 %v2247
    %2855 = vmatprep.subr.bf16.mxu0 %v2254
    %2856 = vmatpush1.bf16.msra.mxu0 %v2253
    %2857 = vmatprep.subr.bf16.mxu0 %v2260
    %2858 = vmatpush1.bf16.msra.mxu0 %v2259
    %2859 = vmatprep.subr.bf16.mxu0 %v2266
    %2860 = vmatpush1.bf16.msra.mxu0 %v2265
    %2861 = vmatprep.subr.bf16.mxu0 %v2272
    %2862 = vmatpush1.bf16.msra.mxu0 %v2271
    %2863 = vmatprep.subr.bf16.mxu0 %v2278
    %2864 = vmatpush1.bf16.msra.mxu0 %v2277
    %2865 = vmatprep.subr.bf16.mxu0 %v2284
    %2866 = vmatpush1.bf16.msra.mxu0 %v2283
    %2867 = vmatprep.mubr.bf16.mxu0 %v1222
    %2868 = vmatmul.mubr.bf16.gmra.mrb[0].mxu0 %v1221
    %v2869 = vpop.f32.mrb[0].mxu0
    %v2870 = vadd.f32 %v2829, %v2869
    %v2871 = vpop.f32.mrb[0].mxu0
    %v2872 = vadd.f32 %v2831, %v2871
    %v2873 = vpop.f32.mrb[0].mxu0
    %v2874 = vpop.f32.mrb[0].mxu0
    %2875 = vdwg.mxu0
    %2876 = vmatprep.subr.bf16.mxu0 %v2290
    %2877 = vmatpush1.bf16.msra.mxu0 %v2289
    %2878 = vmatprep.subr.bf16.mxu0 %v2296
    %2879 = vmatpush1.bf16.msra.mxu0 %v2295
    %2880 = vmatprep.subr.bf16.mxu0 %v2302
    %2881 = vmatpush1.bf16.msra.mxu0 %v2301
    %2882 = vmatprep.subr.bf16.mxu0 %v2308
    %2883 = vmatpush1.bf16.msra.mxu0 %v2307
    %2884 = vmatprep.subr.bf16.mxu0 %v2314
    %2885 = vmatpush1.bf16.msra.mxu0 %v2313
    %2886 = vmatprep.subr.bf16.mxu0 %v2320
    %2887 = vmatpush1.bf16.msra.mxu0 %v2319
    %2888 = vmatprep.subr.bf16.mxu0 %v2326
    %2889 = vmatpush1.bf16.msra.mxu0 %v2325
    %2890 = vmatprep.subr.bf16.mxu0 %v2332
    %2891 = vmatpush1.bf16.msra.mxu0 %v2331
    %2892 = vmatprep.subr.bf16.mxu0 %v2338
    %2893 = vmatpush1.bf16.msra.mxu0 %v2337
    %2894 = vmatprep.subr.bf16.mxu0 %v2344
    %2895 = vmatpush1.bf16.msra.mxu0 %v2343
    %2896 = vmatprep.subr.bf16.mxu0 %v2350
    %2897 = vmatpush1.bf16.msra.mxu0 %v2349
    %2898 = vmatprep.subr.bf16.mxu0 %v2356
    %2899 = vmatpush1.bf16.msra.mxu0 %v2355
    %2900 = vmatprep.subr.bf16.mxu0 %v2362
    %2901 = vmatpush1.bf16.msra.mxu0 %v2361
    %2902 = vmatprep.subr.bf16.mxu0 %v2368
    %2903 = vmatpush1.bf16.msra.mxu0 %v2367
    %2904 = vmatprep.subr.bf16.mxu0 %v2374
    %2905 = vmatpush1.bf16.msra.mxu0 %v2373
    %2906 = vmatprep.subr.bf16.mxu0 %v2380
    %2907 = vmatpush1.bf16.msra.mxu0 %v2379
    %2908 = vmatprep.mubr.bf16.mxu0 %v1224
    %2909 = vmatmul.mubr.bf16.gmra.mrb[0].mxu0 %v1223
    %v2910 = vpop.f32.mrb[0].mxu0
    %v2911 = vadd.f32 %v2870, %v2910
    %v2912 = vpop.f32.mrb[0].mxu0
    %v2913 = vadd.f32 %v2872, %v2912
    %v2914 = vpop.f32.mrb[0].mxu0
    %v2915 = vpop.f32.mrb[0].mxu0
    %2916 = vdwg.mxu0
    %2917 = vmatprep.subr.bf16.mxu0 %v2100
    %2918 = vmatpush1.bf16.msra.mxu0 %v2099
    %2919 = vmatprep.subr.bf16.mxu0 %v2106
    %2920 = vmatpush1.bf16.msra.mxu0 %v2105
    %2921 = vmatprep.subr.bf16.mxu0 %v2112
    %2922 = vmatpush1.bf16.msra.mxu0 %v2111
    %2923 = vmatprep.subr.bf16.mxu0 %v2118
    %2924 = vmatpush1.bf16.msra.mxu0 %v2117
    %2925 = vmatprep.subr.bf16.mxu0 %v2124
    %2926 = vmatpush1.bf16.msra.mxu0 %v2123
    %2927 = vmatprep.subr.bf16.mxu0 %v2130
    %2928 = vmatpush1.bf16.msra.mxu0 %v2129
    %2929 = vmatprep.subr.bf16.mxu0 %v2136
    %2930 = vmatpush1.bf16.msra.mxu0 %v2135
    %2931 = vmatprep.subr.bf16.mxu0 %v2142
    %2932 = vmatpush1.bf16.msra.mxu0 %v2141
    %2933 = vmatprep.subr.bf16.mxu0 %v2148
    %2934 = vmatpush1.bf16.msra.mxu0 %v2147
    %2935 = vmatprep.subr.bf16.mxu0 %v2154
    %2936 = vmatpush1.bf16.msra.mxu0 %v2153
    %2937 = vmatprep.subr.bf16.mxu0 %v2160
    %2938 = vmatpush1.bf16.msra.mxu0 %v2159
    %2939 = vmatprep.subr.bf16.mxu0 %v2166
    %2940 = vmatpush1.bf16.msra.mxu0 %v2165
    %2941 = vmatprep.subr.bf16.mxu0 %v2172
    %2942 = vmatpush1.bf16.msra.mxu0 %v2171
    %2943 = vmatprep.subr.bf16.mxu0 %v2178
    %2944 = vmatpush1.bf16.msra.mxu0 %v2177
    %2945 = vmatprep.subr.bf16.mxu0 %v2184
    %2946 = vmatpush1.bf16.msra.mxu0 %v2183
    %2947 = vmatprep.subr.bf16.mxu0 %v2190
    %2948 = vmatpush1.bf16.msra.mxu0 %v2189
    %2949 = vmatprep.mubr.bf16.mxu0 %v1220
    %2950 = vmatmul.mubr.bf16.gmra.mrb[0].mxu0 %v1219
    %v2951 = vpop.f32.mrb[0].mxu0
    %v2952 = vadd.f32 %v1063, %v2951
    %v2953 = vpop.f32.mrb[0].mxu0
    %v2954 = vadd.f32 %v1067, %v2953
    %v2955 = vpop.f32.mrb[0].mxu0
    %v2956 = vpop.f32.mrb[0].mxu0
    %2957 = vdwg.mxu0
    %2958 = vmatprep.subr.bf16.mxu0 %v2196
    %2959 = vmatpush1.bf16.msra.mxu0 %v2195
    %2960 = vmatprep.subr.bf16.mxu0 %v2202
    %2961 = vmatpush1.bf16.msra.mxu0 %v2201
    %2962 = vmatprep.subr.bf16.mxu0 %v2208
    %2963 = vmatpush1.bf16.msra.mxu0 %v2207
    %2964 = vmatprep.subr.bf16.mxu0 %v2214
    %2965 = vmatpush1.bf16.msra.mxu0 %v2213
    %2966 = vmatprep.subr.bf16.mxu0 %v2220
    %2967 = vmatpush1.bf16.msra.mxu0 %v2219
    %2968 = vmatprep.subr.bf16.mxu0 %v2226
    %2969 = vmatpush1.bf16.msra.mxu0 %v2225
    %2970 = vmatprep.subr.bf16.mxu0 %v2232
    %2971 = vmatpush1.bf16.msra.mxu0 %v2231
    %2972 = vmatprep.subr.bf16.mxu0 %v2238
    %2973 = vmatpush1.bf16.msra.mxu0 %v2237
    %2974 = vmatprep.subr.bf16.mxu0 %v2244
    %2975 = vmatpush1.bf16.msra.mxu0 %v2243
    %2976 = vmatprep.subr.bf16.mxu0 %v2250
    %2977 = vmatpush1.bf16.msra.mxu0 %v2249
    %2978 = vmatprep.subr.bf16.mxu0 %v2256
    %2979 = vmatpush1.bf16.msra.mxu0 %v2255
    %2980 = vmatprep.subr.bf16.mxu0 %v2262
    %2981 = vmatpush1.bf16.msra.mxu0 %v2261
    %2982 = vmatprep.subr.bf16.mxu0 %v2268
    %2983 = vmatpush1.bf16.msra.mxu0 %v2267
    %2984 = vmatprep.subr.bf16.mxu0 %v2274
    %2985 = vmatpush1.bf16.msra.mxu0 %v2273
    %2986 = vmatprep.subr.bf16.mxu0 %v2280
    %2987 = vmatpush1.bf16.msra.mxu0 %v2279
    %2988 = vmatprep.subr.bf16.mxu0 %v2286
    %2989 = vmatpush1.bf16.msra.mxu0 %v2285
    %2990 = vmatprep.mubr.bf16.mxu0 %v1222
    %2991 = vmatmul.mubr.bf16.gmra.mrb[0].mxu0 %v1221
    %v2992 = vpop.f32.mrb[0].mxu0
    %v2993 = vadd.f32 %v2952, %v2992
    %v2994 = vpop.f32.mrb[0].mxu0
    %v2995 = vadd.f32 %v2954, %v2994
    %v2996 = vpop.f32.mrb[0].mxu0
    %v2997 = vpop.f32.mrb[0].mxu0
    %2998 = vdwg.mxu0
    %2999 = vmatprep.subr.bf16.mxu0 %v2292
    %3000 = vmatpush1.bf16.msra.mxu0 %v2291
    %3001 = vmatprep.subr.bf16.mxu0 %v2298
    %3002 = vmatpush1.bf16.msra.mxu0 %v2297
    %3003 = vmatprep.subr.bf16.mxu0 %v2304
    %3004 = vmatpush1.bf16.msra.mxu0 %v2303
    %3005 = vmatprep.subr.bf16.mxu0 %v2310
    %3006 = vmatpush1.bf16.msra.mxu0 %v2309
    %3007 = vmatprep.subr.bf16.mxu0 %v2316
    %3008 = vmatpush1.bf16.msra.mxu0 %v2315
    %3009 = vmatprep.subr.bf16.mxu0 %v2322
    %3010 = vmatpush1.bf16.msra.mxu0 %v2321
    %3011 = vmatprep.subr.bf16.mxu0 %v2328
    %3012 = vmatpush1.bf16.msra.mxu0 %v2327
    %3013 = vmatprep.subr.bf16.mxu0 %v2334
    %3014 = vmatpush1.bf16.msra.mxu0 %v2333
    %3015 = vmatprep.subr.bf16.mxu0 %v2340
    %3016 = vmatpush1.bf16.msra.mxu0 %v2339
    %3017 = vmatprep.subr.bf16.mxu0 %v2346
    %3018 = vmatpush1.bf16.msra.mxu0 %v2345
    %3019 = vmatprep.subr.bf16.mxu0 %v2352
    %3020 = vmatpush1.bf16.msra.mxu0 %v2351
    %3021 = vmatprep.subr.bf16.mxu0 %v2358
    %3022 = vmatpush1.bf16.msra.mxu0 %v2357
    %3023 = vmatprep.subr.bf16.mxu0 %v2364
    %3024 = vmatpush1.bf16.msra.mxu0 %v2363
    %3025 = vmatprep.subr.bf16.mxu0 %v2370
    %3026 = vmatpush1.bf16.msra.mxu0 %v2369
    %3027 = vmatprep.subr.bf16.mxu0 %v2376
    %3028 = vmatpush1.bf16.msra.mxu0 %v2375
    %3029 = vmatprep.subr.bf16.mxu0 %v2382
    %3030 = vmatpush1.bf16.msra.mxu0 %v2381
    %3031 = vmatprep.mubr.bf16.mxu0 %v1224
    %3032 = vmatmul.mubr.bf16.gmra.mrb[0].mxu0 %v1223
    %v3033 = vpop.f32.mrb[0].mxu0
    %v3034 = vadd.f32 %v2993, %v3033
    %v3035 = vpop.f32.mrb[0].mxu0
    %v3036 = vadd.f32 %v2995, %v3035
    %v3037 = vpop.f32.mrb[0].mxu0
    %v3038 = vpop.f32.mrb[0].mxu0
    %3039 = vdwg.mxu0
    %v3040 = vtanh.pop %v2788
    %v3041 = vtanh.pop %v2790
    %v3042 = vtanh.pop %v2911
    %v3043 = vtanh.pop %v2913
    %v3044 = vtanh.pop %v3034
    %v3045 = vtanh.pop %v3036
    %v3046 = vpack.c.bf16 %v3040, %v3040
    %v3047 = vpack.c.bf16 %v3041, %v3041
    %v3048 = vpack.c.bf16 %v3042, %v3042
    %v3049 = vpack.c.bf16 %v3043, %v3043
    %v3050 = vpack.c.bf16 %v3044, %v3044
    %v3051 = vpack.c.bf16 %v3045, %v3045
    %v3052 = vld [vmem:[#allocation8] sm:$0xf]
    %v3053 = vld [vmem:[#allocation8 + $0x4] sm:$0xf]
    %v3054 = vld [vmem:[#allocation8 + $0x8] sm:$0xf]
    %v3055 = vld [vmem:[#allocation8 + $0xc] sm:$0xf]
    %v3056 = vld [vmem:[#allocation8 + $0x10] sm:$0xf]
    %v3057 = vld [vmem:[#allocation8 + $0x14] sm:$0xf]
    %v3058 = vld [vmem:[#allocation8 + $0x18] sm:$0xf]
    %v3059 = vld [vmem:[#allocation8 + $0x1c] sm:$0xf]
    %v3060 = vld [vmem:[#allocation8 + $0x20] sm:$0xf]
    %v3061 = vld [vmem:[#allocation8 + $0x24] sm:$0xf]
    %v3062 = vld [vmem:[#allocation8 + $0x28] sm:$0xf]
    %v3063 = vld [vmem:[#allocation8 + $0x2c] sm:$0xf]
    %v3064 = vld [vmem:[#allocation8 + $0x30] sm:$0xf]
    %v3065 = vld [vmem:[#allocation8 + $0x34] sm:$0xf]
    %v3066 = vld [vmem:[#allocation8 + $0x38] sm:$0xf]
    %v3067 = vld [vmem:[#allocation8 + $0x3c] sm:$0xf]
    %v3068 = vld [vmem:[#allocation8 + $0x40] sm:$0xf]
    %v3069 = vld [vmem:[#allocation8 + $0x44] sm:$0xf]
    %v3070 = vld [vmem:[#allocation8 + $0x48] sm:$0xf]
    %v3071 = vld [vmem:[#allocation8 + $0x4c] sm:$0xf]
    %v3072 = vld [vmem:[#allocation8 + $0x50] sm:$0xf]
    %v3073 = vld [vmem:[#allocation8 + $0x54] sm:$0xf]
    %v3074 = vld [vmem:[#allocation8 + $0x58] sm:$0xf]
    %v3075 = vld [vmem:[#allocation8 + $0x5c] sm:$0xf]
    %v3076 = vld [vmem:[#allocation8 + $0x60] sm:$0xf]
    %v3077 = vld [vmem:[#allocation8 + $0x64] sm:$0xf]
    %v3078 = vld [vmem:[#allocation8 + $0x68] sm:$0xf]
    %v3079 = vld [vmem:[#allocation8 + $0x6c] sm:$0xf]
    %v3080 = vld [vmem:[#allocation8 + $0x70] sm:$0xf]
    %v3081 = vld [vmem:[#allocation8 + $0x74] sm:$0xf]
    %v3082 = vld [vmem:[#allocation8 + $0x78] sm:$0xf]
    %v3083 = vld [vmem:[#allocation8 + $0x7c] sm:$0xf]
    %v3084 = vld [vmem:[#allocation8 + $0x80] sm:$0xf]
    %v3085 = vld [vmem:[#allocation8 + $0x84] sm:$0xf]
    %v3086 = vld [vmem:[#allocation8 + $0x88] sm:$0xf]
    %v3087 = vld [vmem:[#allocation8 + $0x8c] sm:$0xf]
    %v3088 = vld [vmem:[#allocation8 + $0x90] sm:$0xf]
    %v3089 = vld [vmem:[#allocation8 + $0x94] sm:$0xf]
    %v3090 = vld [vmem:[#allocation8 + $0x98] sm:$0xf]
    %v3091 = vld [vmem:[#allocation8 + $0x9c] sm:$0xf]
    %v3092 = vld [vmem:[#allocation8 + $0xa0] sm:$0xf]
    %v3093 = vld [vmem:[#allocation8 + $0xa4] sm:$0xf]
    %v3094 = vld [vmem:[#allocation8 + $0xa8] sm:$0xf]
    %v3095 = vld [vmem:[#allocation8 + $0xac] sm:$0xf]
    %v3096 = vld [vmem:[#allocation8 + $0xb0] sm:$0xf]
    %v3097 = vld [vmem:[#allocation8 + $0xb4] sm:$0xf]
    %v3098 = vld [vmem:[#allocation8 + $0xb8] sm:$0xf]
    %v3099 = vld [vmem:[#allocation8 + $0xbc] sm:$0xf]
    %v3100 = vld [vmem:[#allocation8 + $0xc0] sm:$0xf]
    %v3101 = vld [vmem:[#allocation8 + $0xc4] sm:$0xf]
    %v3102 = vld [vmem:[#allocation8 + $0xc8] sm:$0xf]
    %v3103 = vld [vmem:[#allocation8 + $0xcc] sm:$0xf]
    %v3104 = vld [vmem:[#allocation8 + $0xd0] sm:$0xf]
    %v3105 = vld [vmem:[#allocation8 + $0xd4] sm:$0xf]
    %v3106 = vld [vmem:[#allocation8 + $0xd8] sm:$0xf]
    %v3107 = vld [vmem:[#allocation8 + $0xdc] sm:$0xf]
    %v3108 = vld [vmem:[#allocation8 + $0xe0] sm:$0xf]
    %v3109 = vld [vmem:[#allocation8 + $0xe4] sm:$0xf]
    %v3110 = vld [vmem:[#allocation8 + $0xe8] sm:$0xf]
    %v3111 = vld [vmem:[#allocation8 + $0xec] sm:$0xf]
    %v3112 = vld [vmem:[#allocation8 + $0xf0] sm:$0xf]
    %v3113 = vld [vmem:[#allocation8 + $0xf4] sm:$0xf]
    %v3114 = vld [vmem:[#allocation8 + $0xf8] sm:$0xf]
    %v3115 = vld [vmem:[#allocation8 + $0xfc] sm:$0xf]
    %v3116 = vld [vmem:[#allocation8 + $0x100] sm:$0xf]
    %v3117 = vld [vmem:[#allocation8 + $0x104] sm:$0xf]
    %v3118 = vld [vmem:[#allocation8 + $0x108] sm:$0xf]
    %v3119 = vld [vmem:[#allocation8 + $0x10c] sm:$0xf]
    %v3120 = vld [vmem:[#allocation8 + $0x110] sm:$0xf]
    %v3121 = vld [vmem:[#allocation8 + $0x114] sm:$0xf]
    %v3122 = vld [vmem:[#allocation8 + $0x118] sm:$0xf]
    %v3123 = vld [vmem:[#allocation8 + $0x11c] sm:$0xf]
    %v3124 = vld [vmem:[#allocation8 + $0x120] sm:$0xf]
    %v3125 = vld [vmem:[#allocation8 + $0x124] sm:$0xf]
    %v3126 = vld [vmem:[#allocation8 + $0x128] sm:$0xf]
    %v3127 = vld [vmem:[#allocation8 + $0x12c] sm:$0xf]
    %v3128 = vld [vmem:[#allocation8 + $0x130] sm:$0xf]
    %v3129 = vld [vmem:[#allocation8 + $0x134] sm:$0xf]
    %v3130 = vld [vmem:[#allocation8 + $0x138] sm:$0xf]
    %v3131 = vld [vmem:[#allocation8 + $0x13c] sm:$0xf]
    %v3132 = vld [vmem:[#allocation8 + $0x140] sm:$0xf]
    %v3133 = vld [vmem:[#allocation8 + $0x144] sm:$0xf]
    %v3134 = vld [vmem:[#allocation8 + $0x148] sm:$0xf]
    %v3135 = vld [vmem:[#allocation8 + $0x14c] sm:$0xf]
    %v3136 = vld [vmem:[#allocation8 + $0x150] sm:$0xf]
    %v3137 = vld [vmem:[#allocation8 + $0x154] sm:$0xf]
    %v3138 = vld [vmem:[#allocation8 + $0x158] sm:$0xf]
    %v3139 = vld [vmem:[#allocation8 + $0x15c] sm:$0xf]
    %v3140 = vld [vmem:[#allocation8 + $0x160] sm:$0xf]
    %v3141 = vld [vmem:[#allocation8 + $0x164] sm:$0xf]
    %v3142 = vld [vmem:[#allocation8 + $0x168] sm:$0xf]
    %v3143 = vld [vmem:[#allocation8 + $0x16c] sm:$0xf]
    %v3144 = vld [vmem:[#allocation8 + $0x170] sm:$0xf]
    %v3145 = vld [vmem:[#allocation8 + $0x174] sm:$0xf]
    %v3146 = vld [vmem:[#allocation8 + $0x178] sm:$0xf]
    %v3147 = vld [vmem:[#allocation8 + $0x17c] sm:$0xf]
    %v3148 = vld [vmem:[#allocation10] sm:$0x1]
    %v3150 = vlaneseq
    %v3151 = vshrl.u32 %v3150, 7
    %v3152 = vsub.s32 0, %v3151
    %v3153 = vrot.slane %v3148, %v3152
    %v3251 = vunpack.c.l.b16 %v3052
    %v3252 = vunpack.c.l.b16 %v3053
    %v3253 = vunpack.c.l.b16 %v3054
    %v3254 = vunpack.c.l.b16 %v3055
    %v3255 = vunpack.c.l.b16 %v3056
    %v3256 = vunpack.c.l.b16 %v3057
    %v3257 = vunpack.c.l.b16 %v3058
    %v3258 = vunpack.c.l.b16 %v3059
    %v3259 = vunpack.c.l.b16 %v3060
    %v3260 = vunpack.c.l.b16 %v3061
    %v3261 = vunpack.c.l.b16 %v3062
    %v3262 = vunpack.c.l.b16 %v3063
    %v3263 = vunpack.c.l.b16 %v3064
    %v3264 = vunpack.c.l.b16 %v3065
    %v3265 = vunpack.c.l.b16 %v3066
    %v3266 = vunpack.c.l.b16 %v3067
    %v3267 = vunpack.c.l.b16 %v3068
    %v3268 = vunpack.c.l.b16 %v3069
    %v3269 = vunpack.c.l.b16 %v3070
    %v3270 = vunpack.c.l.b16 %v3071
    %v3271 = vunpack.c.l.b16 %v3072
    %v3272 = vunpack.c.l.b16 %v3073
    %v3273 = vunpack.c.l.b16 %v3074
    %v3274 = vunpack.c.l.b16 %v3075
    %v3275 = vunpack.c.l.b16 %v3076
    %v3276 = vunpack.c.l.b16 %v3077
    %v3277 = vunpack.c.l.b16 %v3078
    %v3278 = vunpack.c.l.b16 %v3079
    %v3279 = vunpack.c.l.b16 %v3080
    %v3280 = vunpack.c.l.b16 %v3081
    %v3281 = vunpack.c.l.b16 %v3082
    %v3282 = vunpack.c.l.b16 %v3083
    %v3283 = vunpack.c.l.b16 %v3084
    %v3284 = vunpack.c.l.b16 %v3085
    %v3285 = vunpack.c.l.b16 %v3086
    %v3286 = vunpack.c.l.b16 %v3087
    %v3287 = vunpack.c.l.b16 %v3088
    %v3288 = vunpack.c.l.b16 %v3089
    %v3289 = vunpack.c.l.b16 %v3090
    %v3290 = vunpack.c.l.b16 %v3091
    %v3291 = vunpack.c.l.b16 %v3092
    %v3292 = vunpack.c.l.b16 %v3093
    %v3293 = vunpack.c.l.b16 %v3094
    %v3294 = vunpack.c.l.b16 %v3095
    %v3295 = vunpack.c.l.b16 %v3096
    %v3296 = vunpack.c.l.b16 %v3097
    %v3297 = vunpack.c.l.b16 %v3098
    %v3298 = vunpack.c.l.b16 %v3099
    %v3299 = vunpack.c.l.b16 %v3100
    %v3300 = vunpack.c.l.b16 %v3101
    %v3301 = vunpack.c.l.b16 %v3102
    %v3302 = vunpack.c.l.b16 %v3103
    %v3303 = vunpack.c.l.b16 %v3104
    %v3304 = vunpack.c.l.b16 %v3105
    %v3305 = vunpack.c.l.b16 %v3106
    %v3306 = vunpack.c.l.b16 %v3107
    %v3307 = vunpack.c.l.b16 %v3108
    %v3308 = vunpack.c.l.b16 %v3109
    %v3309 = vunpack.c.l.b16 %v3110
    %v3310 = vunpack.c.l.b16 %v3111
    %v3311 = vunpack.c.l.b16 %v3112
    %v3312 = vunpack.c.l.b16 %v3113
    %v3313 = vunpack.c.l.b16 %v3114
    %v3314 = vunpack.c.l.b16 %v3115
    %v3315 = vunpack.c.l.b16 %v3116
    %v3316 = vunpack.c.l.b16 %v3117
    %v3317 = vunpack.c.l.b16 %v3118
    %v3318 = vunpack.c.l.b16 %v3119
    %v3319 = vunpack.c.l.b16 %v3120
    %v3320 = vunpack.c.l.b16 %v3121
    %v3321 = vunpack.c.l.b16 %v3122
    %v3322 = vunpack.c.l.b16 %v3123
    %v3323 = vunpack.c.l.b16 %v3124
    %v3324 = vunpack.c.l.b16 %v3125
    %v3325 = vunpack.c.l.b16 %v3126
    %v3326 = vunpack.c.l.b16 %v3127
    %v3327 = vunpack.c.l.b16 %v3128
    %v3328 = vunpack.c.l.b16 %v3129
    %v3329 = vunpack.c.l.b16 %v3130
    %v3330 = vunpack.c.l.b16 %v3131
    %v3331 = vunpack.c.l.b16 %v3132
    %v3332 = vunpack.c.l.b16 %v3133
    %v3333 = vunpack.c.l.b16 %v3134
    %v3334 = vunpack.c.l.b16 %v3135
    %v3335 = vunpack.c.l.b16 %v3136
    %v3336 = vunpack.c.l.b16 %v3137
    %v3337 = vunpack.c.l.b16 %v3138
    %v3338 = vunpack.c.l.b16 %v3139
    %v3339 = vunpack.c.l.b16 %v3140
    %v3340 = vunpack.c.l.b16 %v3141
    %v3341 = vunpack.c.l.b16 %v3142
    %v3342 = vunpack.c.l.b16 %v3143
    %v3343 = vunpack.c.l.b16 %v3144
    %v3344 = vunpack.c.l.b16 %v3145
    %v3345 = vunpack.c.l.b16 %v3146
    %v3346 = vunpack.c.l.b16 %v3147
    %v3347 = vpack.c.b16 %v3252, %v3251
    %v3348 = vpack.c.b16 %v3254, %v3253
    %v3349 = vpack.c.b16 %v3256, %v3255
    %v3350 = vpack.c.b16 %v3258, %v3257
    %v3351 = vpack.c.b16 %v3260, %v3259
    %v3352 = vpack.c.b16 %v3262, %v3261
    %v3353 = vpack.c.b16 %v3264, %v3263
    %v3354 = vpack.c.b16 %v3266, %v3265
    %v3355 = vpack.c.b16 %v3268, %v3267
    %v3356 = vpack.c.b16 %v3270, %v3269
    %v3357 = vpack.c.b16 %v3272, %v3271
    %v3358 = vpack.c.b16 %v3274, %v3273
    %v3359 = vpack.c.b16 %v3276, %v3275
    %v3360 = vpack.c.b16 %v3278, %v3277
    %v3361 = vpack.c.b16 %v3280, %v3279
    %v3362 = vpack.c.b16 %v3282, %v3281
    %v3363 = vpack.c.b16 %v3284, %v3283
    %v3364 = vpack.c.b16 %v3286, %v3285
    %v3365 = vpack.c.b16 %v3288, %v3287
    %v3366 = vpack.c.b16 %v3290, %v3289
    %v3367 = vpack.c.b16 %v3292, %v3291
    %v3368 = vpack.c.b16 %v3294, %v3293
    %v3369 = vpack.c.b16 %v3296, %v3295
    %v3370 = vpack.c.b16 %v3298, %v3297
    %v3371 = vpack.c.b16 %v3300, %v3299
    %v3372 = vpack.c.b16 %v3302, %v3301
    %v3373 = vpack.c.b16 %v3304, %v3303
    %v3374 = vpack.c.b16 %v3306, %v3305
    %v3375 = vpack.c.b16 %v3308, %v3307
    %v3376 = vpack.c.b16 %v3310, %v3309
    %v3377 = vpack.c.b16 %v3312, %v3311
    %v3378 = vpack.c.b16 %v3314, %v3313
    %v3379 = vpack.c.b16 %v3316, %v3315
    %v3380 = vpack.c.b16 %v3318, %v3317
    %v3381 = vpack.c.b16 %v3320, %v3319
    %v3382 = vpack.c.b16 %v3322, %v3321
    %v3383 = vpack.c.b16 %v3324, %v3323
    %v3384 = vpack.c.b16 %v3326, %v3325
    %v3385 = vpack.c.b16 %v3328, %v3327
    %v3386 = vpack.c.b16 %v3330, %v3329
    %v3387 = vpack.c.b16 %v3332, %v3331
    %v3388 = vpack.c.b16 %v3334, %v3333
    %v3389 = vpack.c.b16 %v3336, %v3335
    %v3390 = vpack.c.b16 %v3338, %v3337
    %v3391 = vpack.c.b16 %v3340, %v3339
    %v3392 = vpack.c.b16 %v3342, %v3341
    %v3393 = vpack.c.b16 %v3344, %v3343
    %v3394 = vpack.c.b16 %v3346, %v3345
    %3443 = vmatprep.subr.bf16.mxu0 0
    %3444 = vmatpush1.bf16.msra.mxu0 %v3347
    %3445 = vmatprep.subr.bf16.mxu0 0
    %3446 = vmatpush1.bf16.msra.mxu0 %v3348
    %3447 = vmatprep.subr.bf16.mxu0 0
    %3448 = vmatpush1.bf16.msra.mxu0 %v3349
    %3449 = vmatprep.subr.bf16.mxu0 0
    %3450 = vmatpush1.bf16.msra.mxu0 %v3350
    %3451 = vmatprep.subr.bf16.mxu0 0
    %3452 = vmatpush1.bf16.msra.mxu0 %v3351
    %3453 = vmatprep.subr.bf16.mxu0 0
    %3454 = vmatpush1.bf16.msra.mxu0 %v3352
    %3455 = vmatprep.subr.bf16.mxu0 0
    %3456 = vmatpush1.bf16.msra.mxu0 %v3353
    %3457 = vmatprep.subr.bf16.mxu0 0
    %3458 = vmatpush1.bf16.msra.mxu0 %v3354
    %3459 = vmatprep.subr.bf16.mxu0 0
    %3460 = vmatpush1.bf16.msra.mxu0 %v3355
    %3461 = vmatprep.subr.bf16.mxu0 0
    %3462 = vmatpush1.bf16.msra.mxu0 %v3356
    %3463 = vmatprep.subr.bf16.mxu0 0
    %3464 = vmatpush1.bf16.msra.mxu0 %v3357
    %3465 = vmatprep.subr.bf16.mxu0 0
    %3466 = vmatpush1.bf16.msra.mxu0 %v3358
    %3467 = vmatprep.subr.bf16.mxu0 0
    %3468 = vmatpush1.bf16.msra.mxu0 %v3359
    %3469 = vmatprep.subr.bf16.mxu0 0
    %3470 = vmatpush1.bf16.msra.mxu0 %v3360
    %3471 = vmatprep.subr.bf16.mxu0 0
    %3472 = vmatpush1.bf16.msra.mxu0 %v3361
    %3473 = vmatprep.subr.bf16.mxu0 0
    %3474 = vmatpush1.bf16.msra.mxu0 %v3362
    %3475 = vmatprep.mubr.bf16.mxu0 %v3047
    %3476 = vmatmul.mubr.bf16.gmra.mrb[0].mxu0 %v3046
    %v3477 = vpop.f32.mrb[0].mxu0
    %v3478 = vadd.f32 %v3153, %v3477
    %v3479 = vpop.f32.mrb[0].mxu0
    %v3480 = vpop.f32.mrb[0].mxu0
    %v3481 = vpop.f32.mrb[0].mxu0
    %3482 = vdwg.mxu0
    %3483 = vmatprep.subr.bf16.mxu0 0
    %3484 = vmatpush1.bf16.msra.mxu0 %v3363
    %3485 = vmatprep.subr.bf16.mxu0 0
    %3486 = vmatpush1.bf16.msra.mxu0 %v3364
    %3487 = vmatprep.subr.bf16.mxu0 0
    %3488 = vmatpush1.bf16.msra.mxu0 %v3365
    %3489 = vmatprep.subr.bf16.mxu0 0
    %3490 = vmatpush1.bf16.msra.mxu0 %v3366
    %3491 = vmatprep.subr.bf16.mxu0 0
    %3492 = vmatpush1.bf16.msra.mxu0 %v3367
    %3493 = vmatprep.subr.bf16.mxu0 0
    %3494 = vmatpush1.bf16.msra.mxu0 %v3368
    %3495 = vmatprep.subr.bf16.mxu0 0
    %3496 = vmatpush1.bf16.msra.mxu0 %v3369
    %3497 = vmatprep.subr.bf16.mxu0 0
    %3498 = vmatpush1.bf16.msra.mxu0 %v3370
    %3499 = vmatprep.subr.bf16.mxu0 0
    %3500 = vmatpush1.bf16.msra.mxu0 %v3371
    %3501 = vmatprep.subr.bf16.mxu0 0
    %3502 = vmatpush1.bf16.msra.mxu0 %v3372
    %3503 = vmatprep.subr.bf16.mxu0 0
    %3504 = vmatpush1.bf16.msra.mxu0 %v3373
    %3505 = vmatprep.subr.bf16.mxu0 0
    %3506 = vmatpush1.bf16.msra.mxu0 %v3374
    %3507 = vmatprep.subr.bf16.mxu0 0
    %3508 = vmatpush1.bf16.msra.mxu0 %v3375
    %3509 = vmatprep.subr.bf16.mxu0 0
    %3510 = vmatpush1.bf16.msra.mxu0 %v3376
    %3511 = vmatprep.subr.bf16.mxu0 0
    %3512 = vmatpush1.bf16.msra.mxu0 %v3377
    %3513 = vmatprep.subr.bf16.mxu0 0
    %3514 = vmatpush1.bf16.msra.mxu0 %v3378
    %3515 = vmatprep.mubr.bf16.mxu0 %v3049
    %3516 = vmatmul.mubr.bf16.gmra.mrb[0].mxu0 %v3048
    %v3517 = vpop.f32.mrb[0].mxu0
    %v3518 = vadd.f32 %v3478, %v3517
    %v3519 = vpop.f32.mrb[0].mxu0
    %v3520 = vpop.f32.mrb[0].mxu0
    %v3521 = vpop.f32.mrb[0].mxu0
    %3522 = vdwg.mxu0
    %3523 = vmatprep.subr.bf16.mxu0 0
    %3524 = vmatpush1.bf16.msra.mxu0 %v3379
    %3525 = vmatprep.subr.bf16.mxu0 0
    %3526 = vmatpush1.bf16.msra.mxu0 %v3380
    %3527 = vmatprep.subr.bf16.mxu0 0
    %3528 = vmatpush1.bf16.msra.mxu0 %v3381
    %3529 = vmatprep.subr.bf16.mxu0 0
    %3530 = vmatpush1.bf16.msra.mxu0 %v3382
    %3531 = vmatprep.subr.bf16.mxu0 0
    %3532 = vmatpush1.bf16.msra.mxu0 %v3383
    %3533 = vmatprep.subr.bf16.mxu0 0
    %3534 = vmatpush1.bf16.msra.mxu0 %v3384
    %3535 = vmatprep.subr.bf16.mxu0 0
    %3536 = vmatpush1.bf16.msra.mxu0 %v3385
    %3537 = vmatprep.subr.bf16.mxu0 0
    %3538 = vmatpush1.bf16.msra.mxu0 %v3386
    %3539 = vmatprep.subr.bf16.mxu0 0
    %3540 = vmatpush1.bf16.msra.mxu0 %v3387
    %3541 = vmatprep.subr.bf16.mxu0 0
    %3542 = vmatpush1.bf16.msra.mxu0 %v3388
    %3543 = vmatprep.subr.bf16.mxu0 0
    %3544 = vmatpush1.bf16.msra.mxu0 %v3389
    %3545 = vmatprep.subr.bf16.mxu0 0
    %3546 = vmatpush1.bf16.msra.mxu0 %v3390
    %3547 = vmatprep.subr.bf16.mxu0 0
    %3548 = vmatpush1.bf16.msra.mxu0 %v3391
    %3549 = vmatprep.subr.bf16.mxu0 0
    %3550 = vmatpush1.bf16.msra.mxu0 %v3392
    %3551 = vmatprep.subr.bf16.mxu0 0
    %3552 = vmatpush1.bf16.msra.mxu0 %v3393
    %3553 = vmatprep.subr.bf16.mxu0 0
    %3554 = vmatpush1.bf16.msra.mxu0 %v3394
    %3555 = vmatprep.mubr.bf16.mxu0 %v3051
    %3556 = vmatmul.mubr.bf16.gmra.mrb[0].mxu0 %v3050
    %v3557 = vpop.f32.mrb[0].mxu0
    %v3558 = vadd.f32 %v3518, %v3557
    %v3559 = vpop.f32.mrb[0].mxu0
    %v3560 = vpop.f32.mrb[0].mxu0
    %v3561 = vpop.f32.mrb[0].mxu0
    %3562 = vdwg.mxu0
    %3563 = vst [vmem:[#allocation11] sm:$0xff] %v3558
    // Predicated region
    $region46: #{tpu_custom_call.1} parent=1 // pred_check
      _
    $region47: #{tpu_custom_call.1} parent=1 // pred_check_branch
      %3565 = sbr.rel (0) target = $region49
    $region48: #{tpu_custom_call.1} parent=1 // pred_region
      %s3567 = ssub.s32 128, 128
      %3568 = vsyncadd [#allocation4], %s3567
      %s3570 = sshll.u32 [#allocation11], 4
      %s3571 = int_to_ptr.vmem [resolvable:$true] %s3570
      %3573 = dma.vmem_to_hbm [thread:$0]  %s3571, 128, %s6, [#allocation4]
    $region49: #{tpu_custom_call.1} parent=1 // pred_fallthru
      _
    // Predicated region
    $region50: #{tpu_custom_call.1} parent=1 // pred_check
      _
    $region51: #{tpu_custom_call.1} parent=1 // pred_check_branch
      %3575 = sbr.rel (0) target = $region53
    $region52: #{tpu_custom_call.1} parent=1 // pred_region
      %3576 = dma.done [#allocation4], 128
    $region53: #{tpu_custom_call.1} parent=1 // pred_fallthru
      _
    %3577 = vsyncpa [#allocation3], 1
    %3578 = vsyncpa [#allocation6], 1
    %3579 = vsyncpa [#allocation9], 1
    %3580 = vsyncpa [#allocation4], 1

</llo_original>
